<compile_context>
chip_gen: v5e
topology: v5e:2x2
jax: 0.10.0
libtpu: 0.0.40
codegen_flags: <defaults>
</compile_context>

<pallas_src>
import functools
import math

import jax
import jax.numpy as jnp
from jax.experimental import pallas as pl
from jax.experimental.pallas import tpu as pltpu


def _vmem_limit_bytes(default=32 * 1024 * 1024):
    # ~3/4 of physical VMEM: 48 MiB on v7x (64 MiB/TC), 96 MiB on v5e/v6e
    # (128 MiB); conservative 32 MiB fallback if the query is unavailable.
    try:
        cap = int(pltpu.get_tpu_info().vmem_capacity_bytes)
        return int(min(max(default, (cap * 3) // 4), 100 * 1024 * 1024))
    except Exception:
        return default


# ----------------------------- kernel helpers ------------------------------

def _layernorm(x, w, b, eps=1e-12):
    # BERT-style LayerNorm: biased variance over last dim, eps=1e-12; rsqrt
    # goes to the EUP instead of a VALU divide.
    u = jnp.mean(x, axis=-1, keepdims=True)
    d = x - u
    var = jnp.mean(d * d, axis=-1, keepdims=True)
    return d * jax.lax.rsqrt(var + eps) * w + b


def _gelu(x):
    # TODO(synk): reference uses exact erf-GELU; tanh approximation kept for
    # guaranteed Mosaic lowering (difference < 1e-3 relative).
    return 0.5 * x * (1.0 + jnp.tanh(0.7978845608028654 * (x + 0.044715 * x * x * x)))


# ---------------------------- encoder kernel --------------------------------
# grid = (B // B_TILE, num_layers); per-layer weights streamed on the layer
# axis, [B_TILE, L, H] activation resident in the output block across layers.

def encoder_kernel(num_heads,
                   emb_ref, mask_ref, ln0w_ref, ln0b_ref,
                   qkvw_ref, ow_ref, f1w_ref, f2w_ref, vec_ref,
                   x_ref):
    layer = pl.program_id(1)
    BT, L, H = x_ref.shape
    nh = num_heads
    DH = H // nh
    M = BT * L                     # matmul row count (batch folded into M)
    G = BT * nh                    # attention batch dim (batch x heads)
    FF = f1w_ref.shape[2]
    scale = 1.0 / math.sqrt(DH)

    # Layer 0: x = LayerNorm(dropout(item_emb + pos_emb)); dropout == identity.
    @pl.when(layer == 0)
    def _():
        x_ref[...] = _layernorm(emb_ref[...], ln0w_ref[...], ln0b_ref[...])

    # Packed per-layer vectors: one DMA per layer step instead of ~8 tiny ones.
    vecs = vec_ref[0]                                        # [8, P] f32
    qkv_b = vecs[0:1, :3 * H]
    o_b = vecs[1:2, :H]
    ln1_w, ln1_b = vecs[2:3, :H], vecs[3:4, :H]
    f1_b = vecs[4:5, :FF]
    f2_b = vecs[5:6, :H]
    ln2_w, ln2_b = vecs[6:7, :H], vecs[7:8, :H]

    # Resident activation, flattened so matmul M = B_TILE * L rows.
    x = x_ref[...].reshape(M, H)                             # f32
    xb = x.astype(qkvw_ref.dtype)                            # bf16 MXU input

    # ------------- fused QKV projection: one [M,H] x [H,3H] matmul ----------
    qkv = jnp.dot(xb, qkvw_ref[0],
                  preferred_element_type=jnp.float32) + qkv_b           # [M, 3H]
    qkv = qkv.astype(jnp.bfloat16).reshape(BT, L, 3 * H)

    def heads(c):
        # [BT, L, 3H] -> [BT*nh, L, DH] head-major: lane slices + one stack
        # (no scratch round-trip / masked stores).
        hs = [qkv[:, :, c * H + h * DH: c * H + (h + 1) * DH] for h in range(nh)]
        return jnp.stack(hs, axis=1).reshape(G, L, DH)

    q, k, v = heads(0), heads(1), heads(2)

    # ------------- batched-head attention (bf16 operands, f32 accum) --------
    s = jnp.einsum('gqd,gkd->gqk', q, k,
                   preferred_element_type=jnp.float32) * scale          # [G, L, L]
    s = s.reshape(BT, nh, L, L) + mask_ref[...][:, :, None, :]          # key mask
    s = s - jnp.max(s, axis=-1, keepdims=True)
    p = jnp.exp(s)
    p = p * pl.reciprocal(jnp.sum(p, axis=-1, keepdims=True), approx=True)
    p = p.reshape(G, L, L).astype(jnp.bfloat16)
    ctx = jnp.einsum('gqk,gkd->gqd', p, v,
                     preferred_element_type=jnp.float32)                # [G, L, DH]

    # Merge heads (lane concat) and run a single K=H output projection.
    ctx = ctx.reshape(BT, nh, L, DH)
    ctxm = jnp.concatenate([ctx[:, h] for h in range(nh)], axis=-1)     # [BT, L, H]
    ctxm = ctxm.reshape(M, H).astype(ow_ref.dtype)
    attn = jnp.dot(ctxm, ow_ref[0],
                   preferred_element_type=jnp.float32) + o_b            # [M, H]
    x = _layernorm(attn + x, ln1_w, ln1_b)

    # --------------------------- position-wise FFN ---------------------------
    h1 = jnp.dot(x.astype(f1w_ref.dtype), f1w_ref[0],
                 preferred_element_type=jnp.float32) + f1_b
    h1 = _gelu(h1)
    h2 = jnp.dot(h1.astype(f2w_ref.dtype), f2w_ref[0],
                 preferred_element_type=jnp.float32) + f2_b
    x = _layernorm(h2 + x, ln2_w, ln2_b)
    x_ref[...] = x.reshape(BT, L, H)


# ------------------------ vocab projection kernel ---------------------------
# grid = (V // TV, M // TM), vocab axis OUTER so each out_w tile is loaded once
# and stays resident across the inner row steps.

def vocab_proj_kernel(x_ref, w_ref, b_ref, o_ref):
    o_ref[...] = (jnp.dot(x_ref[...].astype(w_ref.dtype), w_ref[...],
                          preferred_element_type=jnp.float32) + b_ref[...])


# ------------------------------ tile pickers --------------------------------

def _pick_batch_tile(b, l, target_rows=256):
    divisors = [d for d in range(1, b + 1) if b % d == 0]
    fit = [d for d in divisors if d * l <= max(target_rows, l)] or [1]
    bt = max(fit)
    if b // bt < 2:                      # prefer >= 2 parallel steps (v7x: 2 TCs)
        smaller = [d for d in fit if b // d >= 2]
        if smaller:
            bt = max(smaller)
    return bt


def _pick_row_tile(m, target=512):
    for t in (target, 512, 256, 128, 64, 32, 16, 8):
        if t and t <= m and m % t == 0 and t % 8 == 0:
            return t
    return m


def _pick_vocab_tile(v, target=None):
    # Only 128-multiples are legal lane tiles; prefer large tiles (>= 512).
    for t in (target, 2048, 1024, 512, 256, 128):
        if t and t % 128 == 0 and t <= v and v % t == 0:
            return t
    return v  # single full-width tile (legal: equals the array extent)


# ------------------------------ pallas wrappers ------------------------------

def bert4rec_pallas(seq_emb, mask_add, params, num_layers, num_heads,
                    batch_tile=None, vocab_tile=None):
    B, L, H = seq_emb.shape
    FF = params["f1_w"].shape[-1]
    V = params["out_w"].shape[-1]
    P = params["vecs"].shape[-1]
    BT = batch_tile or _pick_batch_tile(B, L)
    assert B % BT == 0
    vmem = _vmem_limit_bytes()

    # -------------------------- encoder call ---------------------------------
    # TODO(synk): on v5e, if the per-layer weight DMA is still exposed, add
    # pipeline_mode=pl.Buffered(3) on the qkv_w / f1_w / f2_w specs.
    enc_in_specs = [
        pl.BlockSpec((BT, L, H), lambda b, l: (b, 0, 0)),         # emb
        pl.BlockSpec((BT, 1, L), lambda b, l: (b, 0, 0)),         # key mask
        pl.BlockSpec((1, H), lambda b, l: (0, 0)),                # ln0_w
        pl.BlockSpec((1, H), lambda b, l: (0, 0)),                # ln0_b
        pl.BlockSpec((1, H, 3 * H), lambda b, l: (l, 0, 0)),      # qkv_w (bf16)
        pl.BlockSpec((1, H, H), lambda b, l: (l, 0, 0)),          # o_w   (bf16)
        pl.BlockSpec((1, H, FF), lambda b, l: (l, 0, 0)),         # f1_w  (bf16)
        pl.BlockSpec((1, FF, H), lambda b, l: (l, 0, 0)),         # f2_w  (bf16)
        pl.BlockSpec((1, 8, P), lambda b, l: (l, 0, 0)),          # packed vectors
    ]
    enc_out_spec = pl.BlockSpec((BT, L, H), lambda b, l: (b, 0, 0))

    seq_out = pl.pallas_call(
        functools.partial(encoder_kernel, num_heads),
        out_shape=jax.ShapeDtypeStruct((B, L, H), jnp.float32),
        grid_spec=pltpu.PrefetchScalarGridSpec(
            num_scalar_prefetch=0,
            grid=(B // BT, num_layers),
            in_specs=enc_in_specs,
            out_specs=enc_out_spec),
        compiler_params=pltpu.CompilerParams(
            dimension_semantics=("parallel", "arbitrary"),
            vmem_limit_bytes=vmem),
    )(seq_emb, mask_add,
      params["ln0_w"], params["ln0_b"],
      params["qkv_w"], params["o_w"], params["f1_w"], params["f2_w"],
      params["vecs"])

    # ---------------------- vocab projection call ----------------------------
    M = B * L
    x2 = seq_out.reshape(M, H)                 # fold batch into the matmul M dim
    TM = _pick_row_tile(M)
    TV = _pick_vocab_tile(V, vocab_tile)

    logits2 = pl.pallas_call(
        vocab_proj_kernel,
        out_shape=jax.ShapeDtypeStruct((M, V), jnp.float32),
        grid_spec=pltpu.PrefetchScalarGridSpec(
            num_scalar_prefetch=0,
            grid=(V // TV, M // TM),           # vocab OUTER, rows inner
            in_specs=[pl.BlockSpec((TM, H), lambda v, r: (r, 0)),
                      pl.BlockSpec((H, TV), lambda v, r: (0, v)),
                      pl.BlockSpec((1, TV), lambda v, r: (0, v))],
            out_specs=pl.BlockSpec((TM, TV), lambda v, r: (r, v))),
        compiler_params=pltpu.CompilerParams(
            dimension_semantics=("parallel", "arbitrary"),
            vmem_limit_bytes=vmem),
    )(x2, params["out_w"], params["out_b"])

    return seq_out, logits2.reshape(B, L, V)


# --------------------------- parameter construction -------------------------

def init_params(key, item_size, hidden, max_len, num_layers, ff, num_heads,
                std=0.02, param_dtype=jnp.bfloat16):
    del num_heads
    ks = jax.random.split(key, 7)

    def nrm(k, shape, dtype=jnp.float32):
        return (std * jax.random.normal(k, shape, dtype=jnp.float32)).astype(dtype)

    item_emb = nrm(ks[0], (item_size, hidden)).at[0].set(0.0)   # padding_idx=0
    pos_emb = nrm(ks[1], (max_len, hidden))

    # Packed per-layer vectors [num_layers, 8, P]:
    # rows = qkv_b, o_b, ln1_w, ln1_b, f1_b, f2_b, ln2_w, ln2_b.
    P = max(3 * hidden, ff)
    vecs = jnp.zeros((num_layers, 8, P), jnp.float32)
    vecs = vecs.at[:, 2, :hidden].set(1.0)    # ln1_w
    vecs = vecs.at[:, 6, :hidden].set(1.0)    # ln2_w

    return dict(
        item_emb=item_emb, pos_emb=pos_emb,
        ln0_w=jnp.ones((1, hidden), jnp.float32),
        ln0_b=jnp.zeros((1, hidden), jnp.float32),
        qkv_w=nrm(ks[2], (num_layers, hidden, 3 * hidden), param_dtype),
        o_w=nrm(ks[3], (num_layers, hidden, hidden), param_dtype),
        f1_w=nrm(ks[4], (num_layers, hidden, ff), param_dtype),
        f2_w=nrm(ks[5], (num_layers, ff, hidden), param_dtype),
        vecs=vecs,
        out_w=nrm(ks[6], (hidden, item_size), param_dtype),
        out_b=jnp.zeros((1, item_size), jnp.float32),
    )


def bert4rec_forward(log_seq, params, num_layers, num_heads,
                     batch_tile=None, vocab_tile=None):
    """Glue: embedding gathers + rank-1 mask construction, then the kernels."""
    B, L = log_seq.shape
    seq_emb = (params["item_emb"][log_seq]
               + params["pos_emb"][jnp.arange(L)][None, :, :]).astype(jnp.float32)
    mask_add = jnp.where(log_seq > 0, 0.0, -1e9).astype(jnp.float32)[:, None, :]
    return bert4rec_pallas(seq_emb, mask_add, params, num_layers, num_heads,
                           batch_tile=batch_tile, vocab_tile=vocab_tile)


# --------------------------- pure-JAX reference ------------------------------

def _reference_forward(log_seq, params, num_layers, num_heads):
    B, L = log_seq.shape
    H = params["pos_emb"].shape[-1]
    FF = params["f1_w"].shape[-1]
    nh, DH = num_heads, H // num_heads
    f32 = lambda a: a.astype(jnp.float32)

    x = f32(params["item_emb"][log_seq] + params["pos_emb"][jnp.arange(L)][None])
    x = _layernorm(x, params["ln0_w"], params["ln0_b"])
    mask = jnp.where(log_seq > 0, 0.0, -1e9).astype(jnp.float32)[:, None, None, :]

    for l in range(num_layers):
        vec = params["vecs"][l]
        qkv_b, o_b = vec[0, :3 * H], vec[1, :H]
        ln1_w, ln1_b = vec[2, :H], vec[3, :H]
        f1_b, f2_b = vec[4, :FF], vec[5, :H]
        ln2_w, ln2_b = vec[6, :H], vec[7, :H]

        qkv = x @ f32(params["qkv_w"][l]) + qkv_b
        q = qkv[..., 0:H].reshape(B, L, nh, DH).transpose(0, 2, 1, 3)
        k = qkv[..., H:2 * H].reshape(B, L, nh, DH).transpose(0, 2, 1, 3)
        v = qkv[..., 2 * H:].reshape(B, L, nh, DH).transpose(0, 2, 1, 3)
        s = jnp.einsum("bhqd,bhkd->bhqk", q, k) / math.sqrt(DH) + mask
        p = jax.nn.softmax(s, axis=-1)
        ctx = jnp.einsum("bhqk,bhkd->bhqd", p, v)
        ctx = ctx.transpose(0, 2, 1, 3).reshape(B, L, H)
        attn = ctx @ f32(params["o_w"][l]) + o_b
        x = _layernorm(attn + x, ln1_w, ln1_b)
        h1 = _gelu(x @ f32(params["f1_w"][l]) + f1_b)
        h2 = h1 @ f32(params["f2_w"][l]) + f2_b
        x = _layernorm(h2 + x, ln2_w, ln2_b)

    logits = x @ f32(params["out_w"]) + params["out_b"]
    return x, logits


# ----------------------------------- main -----------------------------------

if __name__ == "__main__":
    # Small config consistent with the module; item_size exercises vocab tiling
    # and batch=8 gives 2 "parallel" batch blocks (B_TILE=4) for megacore.
    B, L, H = 8, 16, 64
    NUM_LAYERS, NUM_HEADS = 2, 2
    ITEM_SIZE = 2048
    FF = 4 * H

    key = jax.random.PRNGKey(0)
    pkey, skey = jax.random.split(key)

    params = init_params(pkey, ITEM_SIZE, H, L, NUM_LAYERS, FF, NUM_HEADS)
    # Perturb LayerNorm / bias vectors slightly so the packed-vector path is
    # exercised by the reference check (the module inits them to 0 / 1).
    params["vecs"] = params["vecs"] + 0.02 * jax.random.normal(
        jax.random.fold_in(pkey, 1), params["vecs"].shape)
    params["out_b"] = 0.02 * jax.random.normal(
        jax.random.fold_in(pkey, 2), params["out_b"].shape)
    params["ln0_b"] = 0.02 * jax.random.normal(
        jax.random.fold_in(pkey, 3), params["ln0_b"].shape)

    log_seq = jax.random.randint(skey, (B, L), 0, ITEM_SIZE, dtype=jnp.int32)
    log_seq = log_seq.at[:, -3:].set(0)        # some padding positions (id 0)

    seq_out, logits = bert4rec_forward(log_seq, params, NUM_LAYERS, NUM_HEADS)
    jax.block_until_ready((seq_out, logits))

    assert seq_out.shape == (B, L, H)
    assert logits.shape == (B, L, ITEM_SIZE)
    assert bool(jnp.all(jnp.isfinite(seq_out)))
    assert bool(jnp.all(jnp.isfinite(logits)))

    ref_seq, ref_logits = _reference_forward(log_seq, params, NUM_LAYERS, NUM_HEADS)
    err_seq = float(jnp.max(jnp.abs(seq_out - ref_seq)))
    err_log = float(jnp.max(jnp.abs(logits - ref_logits)))
    assert err_seq < 1e-1 and err_log < 1e-1, (err_seq, err_log)

    print("KERNEL_OK")
</pallas_src>

<mosaic_0001>
module attributes {stable_mosaic.version = 11 : i64} {
  func.func @encoder_kernel(%arg0: i32, %arg1: i32, %arg2: memref<4x16x64xf32, #tpu.memory_space<vmem>>, %arg3: memref<4x1x16xf32, #tpu.memory_space<vmem>>, %arg4: memref<1x64xf32, #tpu.memory_space<vmem>>, %arg5: memref<1x64xf32, #tpu.memory_space<vmem>>, %arg6: memref<1x64x192xbf16, #tpu.memory_space<vmem>>, %arg7: memref<1x64x64xbf16, #tpu.memory_space<vmem>>, %arg8: memref<1x64x256xbf16, #tpu.memory_space<vmem>>, %arg9: memref<1x256x64xbf16, #tpu.memory_space<vmem>>, %arg10: memref<1x8x256xf32, #tpu.memory_space<vmem>>, %arg11: memref<4x16x64xf32, #tpu.memory_space<vmem>>) attributes {dimension_semantics = [#tpu.dimension_semantics<parallel>, #tpu.dimension_semantics<arbitrary>], iteration_bounds = array<i64: 2, 2>, scalar_prefetch = 0 : i64, scratch_operands = 0 : i64, tpu.core_type = #tpu.core_type<tc>, window_params = [{transform_indices = @transform_0, window_bounds = array<i64: 4, 16, 64>}, {transform_indices = @transform_1, window_bounds = array<i64: 4, 1, 16>}, {pipeline_mode = #tpu.pipeline_mode<synchronous>, transform_indices = @transform_2, window_bounds = array<i64: 1, 64>}, {pipeline_mode = #tpu.pipeline_mode<synchronous>, transform_indices = @transform_3, window_bounds = array<i64: 1, 64>}, {transform_indices = @transform_4, window_bounds = array<i64: 1, 64, 192>}, {transform_indices = @transform_5, window_bounds = array<i64: 1, 64, 64>}, {transform_indices = @transform_6, window_bounds = array<i64: 1, 64, 256>}, {transform_indices = @transform_7, window_bounds = array<i64: 1, 256, 64>}, {transform_indices = @transform_8, window_bounds = array<i64: 1, 8, 256>}, {transform_indices = @transform_9, window_bounds = array<i64: 4, 16, 64>}]} {
    %c0_i32 = arith.constant 0 : i32
    %0 = arith.cmpi eq, %arg1, %c0_i32 : i32
    %1 = arith.extui %0 : i1 to i32
    %c0_i32_0 = arith.constant 0 : i32
    %2 = arith.cmpi ne, %1, %c0_i32_0 : i32
    scf.if %2 {
      %c0_46 = arith.constant 0 : index
      %c0_47 = arith.constant 0 : index
      %c0_48 = arith.constant 0 : index
      %144 = vector.load %arg2[%c0_46, %c0_47, %c0_48] : memref<4x16x64xf32, #tpu.memory_space<vmem>>, vector<4x16x64xf32>
      %c0_49 = arith.constant 0 : index
      %c0_50 = arith.constant 0 : index
      %145 = vector.load %arg4[%c0_49, %c0_50] : memref<1x64xf32, #tpu.memory_space<vmem>>, vector<1x64xf32>
      %c0_51 = arith.constant 0 : index
      %c0_52 = arith.constant 0 : index
      %146 = vector.load %arg5[%c0_51, %c0_52] : memref<1x64xf32, #tpu.memory_space<vmem>>, vector<1x64xf32>
      %cst_53 = arith.constant dense<0.000000e+00> : vector<4x16xf32>
      %147 = vector.multi_reduction <add>, %144, %cst_53 [2] : vector<4x16x64xf32> to vector<4x16xf32>
      %148 = vector.shape_cast %147 : vector<4x16xf32> to vector<4x16x1xf32>
      %cst_54 = arith.constant 6.400000e+01 : f32
      %149 = vector.broadcast %cst_54 : f32 to vector<4x16x1xf32>
      %150 = arith.divf %148, %149 : vector<4x16x1xf32>
      %151 = vector.broadcast %150 : vector<4x16x1xf32> to vector<4x16x64xf32>
      %152 = arith.subf %144, %151 : vector<4x16x64xf32>
      %153 = arith.mulf %152, %152 : vector<4x16x64xf32>
      %cst_55 = arith.constant dense<0.000000e+00> : vector<4x16xf32>
      %154 = vector.multi_reduction <add>, %153, %cst_55 [2] : vector<4x16x64xf32> to vector<4x16xf32>
      %155 = vector.shape_cast %154 : vector<4x16xf32> to vector<4x16x1xf32>
      %cst_56 = arith.constant 6.400000e+01 : f32
      %156 = vector.broadcast %cst_56 : f32 to vector<4x16x1xf32>
      %157 = arith.divf %155, %156 : vector<4x16x1xf32>
      %cst_57 = arith.constant 9.99999996E-13 : f32
      %158 = vector.broadcast %cst_57 : f32 to vector<4x16x1xf32>
      %159 = arith.addf %157, %158 : vector<4x16x1xf32>
      %160 = math.rsqrt %159 : vector<4x16x1xf32>
      %161 = vector.broadcast %160 : vector<4x16x1xf32> to vector<4x16x64xf32>
      %162 = arith.mulf %152, %161 : vector<4x16x64xf32>
      %163 = vector.shape_cast %145 : vector<1x64xf32> to vector<1x1x64xf32>
      %164 = vector.broadcast %163 : vector<1x1x64xf32> to vector<4x16x64xf32>
      %165 = arith.mulf %162, %164 : vector<4x16x64xf32>
      %166 = vector.shape_cast %146 : vector<1x64xf32> to vector<1x1x64xf32>
      %167 = vector.broadcast %166 : vector<1x1x64xf32> to vector<4x16x64xf32>
      %168 = arith.addf %165, %167 : vector<4x16x64xf32>
      %c0_58 = arith.constant 0 : index
      %c0_59 = arith.constant 0 : index
      %c0_60 = arith.constant 0 : index
      %169 = vector.load %arg11[%c0_58, %c0_59, %c0_60] : memref<4x16x64xf32, #tpu.memory_space<vmem>>, vector<4x16x64xf32>
      tpu.vector_store %arg11[%c0_58, %c0_59, %c0_60], %168 {strides = array<i32>} : memref<4x16x64xf32, #tpu.memory_space<vmem>>, vector<4x16x64xf32>,
    } else {
    }
    %c0 = arith.constant 0 : index
    %c0_1 = arith.constant 0 : index
    %c0_2 = arith.constant 0 : index
    %3 = vector.load %arg10[%c0, %c0_1, %c0_2] : memref<1x8x256xf32, #tpu.memory_space<vmem>>, vector<1x8x256xf32>
    %4 = vector.shape_cast %3 : vector<1x8x256xf32> to vector<8x256xf32>
    %5 = vector.extract_strided_slice %4 {offsets = [0, 0], sizes = [1, 192], strides = [1, 1]} : vector<8x256xf32> to vector<1x192xf32>
    %6 = vector.extract_strided_slice %4 {offsets = [1, 0], sizes = [1, 64], strides = [1, 1]} : vector<8x256xf32> to vector<1x64xf32>
    %7 = vector.extract_strided_slice %4 {offsets = [2, 0], sizes = [1, 64], strides = [1, 1]} : vector<8x256xf32> to vector<1x64xf32>
    %8 = vector.extract_strided_slice %4 {offsets = [3, 0], sizes = [1, 64], strides = [1, 1]} : vector<8x256xf32> to vector<1x64xf32>
    %9 = vector.extract_strided_slice %4 {offsets = [4, 0], sizes = [1, 256], strides = [1, 1]} : vector<8x256xf32> to vector<1x256xf32>
    %10 = vector.extract_strided_slice %4 {offsets = [5, 0], sizes = [1, 64], strides = [1, 1]} : vector<8x256xf32> to vector<1x64xf32>
    %11 = vector.extract_strided_slice %4 {offsets = [6, 0], sizes = [1, 64], strides = [1, 1]} : vector<8x256xf32> to vector<1x64xf32>
    %12 = vector.extract_strided_slice %4 {offsets = [7, 0], sizes = [1, 64], strides = [1, 1]} : vector<8x256xf32> to vector<1x64xf32>
    %c0_3 = arith.constant 0 : index
    %c0_4 = arith.constant 0 : index
    %c0_5 = arith.constant 0 : index
    %13 = vector.load %arg11[%c0_3, %c0_4, %c0_5] : memref<4x16x64xf32, #tpu.memory_space<vmem>>, vector<4x16x64xf32>
    %14 = vector.shape_cast %13 : vector<4x16x64xf32> to vector<64x64xf32>
    %15 = arith.truncf %14 : vector<64x64xf32> to vector<64x64xbf16>
    %c0_6 = arith.constant 0 : index
    %c0_7 = arith.constant 0 : index
    %c0_8 = arith.constant 0 : index
    %16 = vector.load %arg6[%c0_6, %c0_7, %c0_8] : memref<1x64x192xbf16, #tpu.memory_space<vmem>>, vector<1x64x192xbf16>
    %17 = vector.shape_cast %16 : vector<1x64x192xbf16> to vector<64x192xbf16>
    %cst = arith.constant dense<0.000000e+00> : vector<64x192xf32>
    %18 = tpu.matmul %15, %17, %cst {dimension_numbers = #tpu.dot_dimension_numbers<[1], [0], [0], [1], [0, 0, 1, 1], [], []>} : vector<64x64xbf16>, vector<64x192xbf16>, vector<64x192xf32> -> vector<64x192xf32>
    %19 = vector.broadcast %5 : vector<1x192xf32> to vector<64x192xf32>
    %20 = arith.addf %18, %19 : vector<64x192xf32>
    %21 = arith.truncf %20 : vector<64x192xf32> to vector<64x192xbf16>
    %22 = vector.shape_cast %21 : vector<64x192xbf16> to vector<4x16x192xbf16>
    %23 = vector.extract_strided_slice %22 {offsets = [0, 0, 0], sizes = [4, 16, 32], strides = [1, 1, 1]} : vector<4x16x192xbf16> to vector<4x16x32xbf16>
    %24 = vector.extract_strided_slice %22 {offsets = [0, 0, 32], sizes = [4, 16, 32], strides = [1, 1, 1]} : vector<4x16x192xbf16> to vector<4x16x32xbf16>
    %25 = vector.shape_cast %23 : vector<4x16x32xbf16> to vector<4x1x16x32xbf16>
    %26 = vector.shape_cast %24 : vector<4x16x32xbf16> to vector<4x1x16x32xbf16>
    %27 = tpu.concatenate %25, %26 in 1 : vector<4x1x16x32xbf16>, vector<4x1x16x32xbf16> -> vector<4x2x16x32xbf16>
    %28 = vector.shape_cast %27 : vector<4x2x16x32xbf16> to vector<8x16x32xbf16>
    %29 = vector.extract_strided_slice %22 {offsets = [0, 0, 64], sizes = [4, 16, 32], strides = [1, 1, 1]} : vector<4x16x192xbf16> to vector<4x16x32xbf16>
    %30 = vector.extract_strided_slice %22 {offsets = [0, 0, 96], sizes = [4, 16, 32], strides = [1, 1, 1]} : vector<4x16x192xbf16> to vector<4x16x32xbf16>
    %31 = vector.shape_cast %29 : vector<4x16x32xbf16> to vector<4x1x16x32xbf16>
    %32 = vector.shape_cast %30 : vector<4x16x32xbf16> to vector<4x1x16x32xbf16>
    %33 = tpu.concatenate %31, %32 in 1 : vector<4x1x16x32xbf16>, vector<4x1x16x32xbf16> -> vector<4x2x16x32xbf16>
    %34 = vector.shape_cast %33 : vector<4x2x16x32xbf16> to vector<8x16x32xbf16>
    %35 = vector.extract_strided_slice %22 {offsets = [0, 0, 128], sizes = [4, 16, 32], strides = [1, 1, 1]} : vector<4x16x192xbf16> to vector<4x16x32xbf16>
    %36 = vector.extract_strided_slice %22 {offsets = [0, 0, 160], sizes = [4, 16, 32], strides = [1, 1, 1]} : vector<4x16x192xbf16> to vector<4x16x32xbf16>
    %37 = vector.shape_cast %35 : vector<4x16x32xbf16> to vector<4x1x16x32xbf16>
    %38 = vector.shape_cast %36 : vector<4x16x32xbf16> to vector<4x1x16x32xbf16>
    %39 = tpu.concatenate %37, %38 in 1 : vector<4x1x16x32xbf16>, vector<4x1x16x32xbf16> -> vector<4x2x16x32xbf16>
    %40 = vector.shape_cast %39 : vector<4x2x16x32xbf16> to vector<8x16x32xbf16>
    "tpu.trace_start"() <{level = 10 : i32, message = "gqd,gkd->gqk"}> : () -> ()
    %cst_9 = arith.constant dense<0.000000e+00> : vector<8x16x16xf32>
    %41 = tpu.matmul %28, %34, %cst_9 {dimension_numbers = #tpu.dot_dimension_numbers<[2], [2], [1], [1], [0, 0, 0, 1, 1, 1], [0], [0]>} : vector<8x16x32xbf16>, vector<8x16x32xbf16>, vector<8x16x16xf32> -> vector<8x16x16xf32>
    "tpu.trace_stop"() : () -> ()
    %cst_10 = arith.constant 0.176776692 : f32
    %42 = vector.broadcast %cst_10 : f32 to vector<8x16x16xf32>
    %43 = arith.mulf %41, %42 : vector<8x16x16xf32>
    %44 = vector.shape_cast %43 : vector<8x16x16xf32> to vector<4x2x16x16xf32>
    %c0_11 = arith.constant 0 : index
    %c0_12 = arith.constant 0 : index
    %c0_13 = arith.constant 0 : index
    %45 = vector.load %arg3[%c0_11, %c0_12, %c0_13] : memref<4x1x16xf32, #tpu.memory_space<vmem>>, vector<4x1x16xf32>
    %46 = vector.shape_cast %45 : vector<4x1x16xf32> to vector<4x1x1x16xf32>
    %47 = vector.broadcast %46 : vector<4x1x1x16xf32> to vector<4x2x16x16xf32>
    %48 = arith.addf %44, %47 : vector<4x2x16x16xf32>
    %cst_14 = arith.constant dense<0xFF800000> : vector<4x2x16xf32>
    %49 = vector.multi_reduction <maximumf>, %48, %cst_14 [3] : vector<4x2x16x16xf32> to vector<4x2x16xf32>
    %50 = vector.shape_cast %49 : vector<4x2x16xf32> to vector<4x2x16x1xf32>
    %51 = vector.broadcast %50 : vector<4x2x16x1xf32> to vector<4x2x16x16xf32>
    %52 = arith.subf %48, %51 : vector<4x2x16x16xf32>
    %53 = math.exp %52 : vector<4x2x16x16xf32>
    %cst_15 = arith.constant dense<0.000000e+00> : vector<4x2x16xf32>
    %54 = vector.multi_reduction <add>, %53, %cst_15 [3] : vector<4x2x16x16xf32> to vector<4x2x16xf32>
    %55 = vector.shape_cast %54 : vector<4x2x16xf32> to vector<4x2x16x1xf32>
    %56 = tpu.reciprocal %55 {approx = true} : vector<4x2x16x1xf32> -> vector<4x2x16x1xf32>
    %57 = vector.broadcast %56 : vector<4x2x16x1xf32> to vector<4x2x16x16xf32>
    %58 = arith.mulf %53, %57 : vector<4x2x16x16xf32>
    %59 = vector.shape_cast %58 : vector<4x2x16x16xf32> to vector<8x16x16xf32>
    %60 = arith.truncf %59 : vector<8x16x16xf32> to vector<8x16x16xbf16>
    "tpu.trace_start"() <{level = 10 : i32, message = "gqk,gkd->gqd"}> : () -> ()
    %cst_16 = arith.constant dense<0.000000e+00> : vector<8x16x32xf32>
    %61 = tpu.matmul %60, %40, %cst_16 {dimension_numbers = #tpu.dot_dimension_numbers<[2], [1], [1], [2], [0, 0, 0, 1, 1, 2], [0], [0]>} : vector<8x16x16xbf16>, vector<8x16x32xbf16>, vector<8x16x32xf32> -> vector<8x16x32xf32>
    "tpu.trace_stop"() : () -> ()
    %62 = vector.shape_cast %61 : vector<8x16x32xf32> to vector<4x2x16x32xf32>
    %63 = vector.extract_strided_slice %62 {offsets = [0, 0, 0, 0], sizes = [4, 1, 16, 32], strides = [1, 1, 1, 1]} : vector<4x2x16x32xf32> to vector<4x1x16x32xf32>
    %64 = vector.shape_cast %63 : vector<4x1x16x32xf32> to vector<4x16x32xf32>
    %65 = vector.extract_strided_slice %62 {offsets = [0, 1, 0, 0], sizes = [4, 1, 16, 32], strides = [1, 1, 1, 1]} : vector<4x2x16x32xf32> to vector<4x1x16x32xf32>
    %66 = vector.shape_cast %65 : vector<4x1x16x32xf32> to vector<4x16x32xf32>
    %67 = tpu.concatenate %64, %66 in 2 : vector<4x16x32xf32>, vector<4x16x32xf32> -> vector<4x16x64xf32>
    %68 = vector.shape_cast %67 : vector<4x16x64xf32> to vector<64x64xf32>
    %69 = arith.truncf %68 : vector<64x64xf32> to vector<64x64xbf16>
    %c0_17 = arith.constant 0 : index
    %c0_18 = arith.constant 0 : index
    %c0_19 = arith.constant 0 : index
    %70 = vector.load %arg7[%c0_17, %c0_18, %c0_19] : memref<1x64x64xbf16, #tpu.memory_space<vmem>>, vector<1x64x64xbf16>
    %71 = vector.shape_cast %70 : vector<1x64x64xbf16> to vector<64x64xbf16>
    %cst_20 = arith.constant dense<0.000000e+00> : vector<64x64xf32>
    %72 = tpu.matmul %69, %71, %cst_20 {dimension_numbers = #tpu.dot_dimension_numbers<[1], [0], [0], [1], [0, 0, 1, 1], [], []>} : vector<64x64xbf16>, vector<64x64xbf16>, vector<64x64xf32> -> vector<64x64xf32>
    %73 = vector.broadcast %6 : vector<1x64xf32> to vector<64x64xf32>
    %74 = arith.addf %72, %73 : vector<64x64xf32>
    %75 = arith.addf %74, %14 : vector<64x64xf32>
    %cst_21 = arith.constant dense<0.000000e+00> : vector<64xf32>
    %76 = vector.multi_reduction <add>, %75, %cst_21 [1] : vector<64x64xf32> to vector<64xf32>
    %77 = vector.shape_cast %76 : vector<64xf32> to vector<64x1xf32>
    %cst_22 = arith.constant 6.400000e+01 : f32
    %78 = vector.broadcast %cst_22 : f32 to vector<64x1xf32>
    %79 = arith.divf %77, %78 : vector<64x1xf32>
    %80 = vector.broadcast %79 : vector<64x1xf32> to vector<64x64xf32>
    %81 = arith.subf %75, %80 : vector<64x64xf32>
    %82 = arith.mulf %81, %81 : vector<64x64xf32>
    %cst_23 = arith.constant dense<0.000000e+00> : vector<64xf32>
    %83 = vector.multi_reduction <add>, %82, %cst_23 [1] : vector<64x64xf32> to vector<64xf32>
    %84 = vector.shape_cast %83 : vector<64xf32> to vector<64x1xf32>
    %cst_24 = arith.constant 6.400000e+01 : f32
    %85 = vector.broadcast %cst_24 : f32 to vector<64x1xf32>
    %86 = arith.divf %84, %85 : vector<64x1xf32>
    %cst_25 = arith.constant 9.99999996E-13 : f32
    %87 = vector.broadcast %cst_25 : f32 to vector<64x1xf32>
    %88 = arith.addf %86, %87 : vector<64x1xf32>
    %89 = math.rsqrt %88 : vector<64x1xf32>
    %90 = vector.broadcast %89 : vector<64x1xf32> to vector<64x64xf32>
    %91 = arith.mulf %81, %90 : vector<64x64xf32>
    %92 = vector.broadcast %7 : vector<1x64xf32> to vector<64x64xf32>
    %93 = arith.mulf %91, %92 : vector<64x64xf32>
    %94 = vector.broadcast %8 : vector<1x64xf32> to vector<64x64xf32>
    %95 = arith.addf %93, %94 : vector<64x64xf32>
    %96 = arith.truncf %95 : vector<64x64xf32> to vector<64x64xbf16>
    %c0_26 = arith.constant 0 : index
    %c0_27 = arith.constant 0 : index
    %c0_28 = arith.constant 0 : index
    %97 = vector.load %arg8[%c0_26, %c0_27, %c0_28] : memref<1x64x256xbf16, #tpu.memory_space<vmem>>, vector<1x64x256xbf16>
    %98 = vector.shape_cast %97 : vector<1x64x256xbf16> to vector<64x256xbf16>
    %cst_29 = arith.constant dense<0.000000e+00> : vector<64x256xf32>
    %99 = tpu.matmul %96, %98, %cst_29 {dimension_numbers = #tpu.dot_dimension_numbers<[1], [0], [0], [1], [0, 0, 1, 1], [], []>} : vector<64x64xbf16>, vector<64x256xbf16>, vector<64x256xf32> -> vector<64x256xf32>
    %100 = vector.broadcast %9 : vector<1x256xf32> to vector<64x256xf32>
    %101 = arith.addf %99, %100 : vector<64x256xf32>
    %cst_30 = arith.constant 5.000000e-01 : f32
    %102 = vector.broadcast %cst_30 : f32 to vector<64x256xf32>
    %103 = arith.mulf %102, %101 : vector<64x256xf32>
    %cst_31 = arith.constant 4.471500e-02 : f32
    %104 = vector.broadcast %cst_31 : f32 to vector<64x256xf32>
    %105 = arith.mulf %104, %101 : vector<64x256xf32>
    %106 = arith.mulf %105, %101 : vector<64x256xf32>
    %107 = arith.mulf %106, %101 : vector<64x256xf32>
    %108 = arith.addf %101, %107 : vector<64x256xf32>
    %cst_32 = arith.constant 0.797884583 : f32
    %109 = vector.broadcast %cst_32 : f32 to vector<64x256xf32>
    %110 = arith.mulf %109, %108 : vector<64x256xf32>
    %111 = math.tanh %110 : vector<64x256xf32>
    %cst_33 = arith.constant 1.000000e+00 : f32
    %112 = vector.broadcast %cst_33 : f32 to vector<64x256xf32>
    %113 = arith.addf %112, %111 : vector<64x256xf32>
    %114 = arith.mulf %103, %113 : vector<64x256xf32>
    %115 = arith.truncf %114 : vector<64x256xf32> to vector<64x256xbf16>
    %c0_34 = arith.constant 0 : index
    %c0_35 = arith.constant 0 : index
    %c0_36 = arith.constant 0 : index
    %116 = vector.load %arg9[%c0_34, %c0_35, %c0_36] : memref<1x256x64xbf16, #tpu.memory_space<vmem>>, vector<1x256x64xbf16>
    %117 = vector.shape_cast %116 : vector<1x256x64xbf16> to vector<256x64xbf16>
    %cst_37 = arith.constant dense<0.000000e+00> : vector<64x64xf32>
    %118 = tpu.matmul %115, %117, %cst_37 {dimension_numbers = #tpu.dot_dimension_numbers<[1], [0], [0], [1], [0, 0, 1, 1], [], []>} : vector<64x256xbf16>, vector<256x64xbf16>, vector<64x64xf32> -> vector<64x64xf32>
    %119 = vector.broadcast %10 : vector<1x64xf32> to vector<64x64xf32>
    %120 = arith.addf %118, %119 : vector<64x64xf32>
    %121 = arith.addf %120, %95 : vector<64x64xf32>
    %cst_38 = arith.constant dense<0.000000e+00> : vector<64xf32>
    %122 = vector.multi_reduction <add>, %121, %cst_38 [1] : vector<64x64xf32> to vector<64xf32>
    %123 = vector.shape_cast %122 : vector<64xf32> to vector<64x1xf32>
    %cst_39 = arith.constant 6.400000e+01 : f32
    %124 = vector.broadcast %cst_39 : f32 to vector<64x1xf32>
    %125 = arith.divf %123, %124 : vector<64x1xf32>
    %126 = vector.broadcast %125 : vector<64x1xf32> to vector<64x64xf32>
    %127 = arith.subf %121, %126 : vector<64x64xf32>
    %128 = arith.mulf %127, %127 : vector<64x64xf32>
    %cst_40 = arith.constant dense<0.000000e+00> : vector<64xf32>
    %129 = vector.multi_reduction <add>, %128, %cst_40 [1] : vector<64x64xf32> to vector<64xf32>
    %130 = vector.shape_cast %129 : vector<64xf32> to vector<64x1xf32>
    %cst_41 = arith.constant 6.400000e+01 : f32
    %131 = vector.broadcast %cst_41 : f32 to vector<64x1xf32>
    %132 = arith.divf %130, %131 : vector<64x1xf32>
    %cst_42 = arith.constant 9.99999996E-13 : f32
    %133 = vector.broadcast %cst_42 : f32 to vector<64x1xf32>
    %134 = arith.addf %132, %133 : vector<64x1xf32>
    %135 = math.rsqrt %134 : vector<64x1xf32>
    %136 = vector.broadcast %135 : vector<64x1xf32> to vector<64x64xf32>
    %137 = arith.mulf %127, %136 : vector<64x64xf32>
    %138 = vector.broadcast %11 : vector<1x64xf32> to vector<64x64xf32>
    %139 = arith.mulf %137, %138 : vector<64x64xf32>
    %140 = vector.broadcast %12 : vector<1x64xf32> to vector<64x64xf32>
    %141 = arith.addf %139, %140 : vector<64x64xf32>
    %142 = vector.shape_cast %141 : vector<64x64xf32> to vector<4x16x64xf32>
    %c0_43 = arith.constant 0 : index
    %c0_44 = arith.constant 0 : index
    %c0_45 = arith.constant 0 : index
    %143 = vector.load %arg11[%c0_43, %c0_44, %c0_45] : memref<4x16x64xf32, #tpu.memory_space<vmem>>, vector<4x16x64xf32>
    tpu.vector_store %arg11[%c0_43, %c0_44, %c0_45], %142 {strides = array<i32>} : memref<4x16x64xf32, #tpu.memory_space<vmem>>, vector<4x16x64xf32>,
    return
  }
  func.func @transform_0(%arg0: i32, %arg1: i32) -> (i32, i32, i32) {
    %c0_i32 = arith.constant 0 : i32
    %c0_i32_0 = arith.constant 0 : i32
    %c0_i32_1 = arith.constant 0 : i32
    return %arg0, %c0_i32, %c0_i32_0 : i32, i32, i32
  }
  func.func @transform_1(%arg0: i32, %arg1: i32) -> (i32, i32, i32) {
    %c0_i32 = arith.constant 0 : i32
    %c0_i32_0 = arith.constant 0 : i32
    %c0_i32_1 = arith.constant 0 : i32
    return %arg0, %c0_i32, %c0_i32_0 : i32, i32, i32
  }
  func.func @transform_2(%arg0: i32, %arg1: i32) -> (i32, i32) {
    %c0_i32 = arith.constant 0 : i32
    %c0_i32_0 = arith.constant 0 : i32
    %c0_i32_1 = arith.constant 0 : i32
    return %c0_i32, %c0_i32_0 : i32, i32
  }
  func.func @transform_3(%arg0: i32, %arg1: i32) -> (i32, i32) {
    %c0_i32 = arith.constant 0 : i32
    %c0_i32_0 = arith.constant 0 : i32
    %c0_i32_1 = arith.constant 0 : i32
    return %c0_i32, %c0_i32_0 : i32, i32
  }
  func.func @transform_4(%arg0: i32, %arg1: i32) -> (i32, i32, i32) {
    %c0_i32 = arith.constant 0 : i32
    %c0_i32_0 = arith.constant 0 : i32
    %c0_i32_1 = arith.constant 0 : i32
    return %arg1, %c0_i32, %c0_i32_0 : i32, i32, i32
  }
  func.func @transform_5(%arg0: i32, %arg1: i32) -> (i32, i32, i32) {
    %c0_i32 = arith.constant 0 : i32
    %c0_i32_0 = arith.constant 0 : i32
    %c0_i32_1 = arith.constant 0 : i32
    return %arg1, %c0_i32, %c0_i32_0 : i32, i32, i32
  }
  func.func @transform_6(%arg0: i32, %arg1: i32) -> (i32, i32, i32) {
    %c0_i32 = arith.constant 0 : i32
    %c0_i32_0 = arith.constant 0 : i32
    %c0_i32_1 = arith.constant 0 : i32
    return %arg1, %c0_i32, %c0_i32_0 : i32, i32, i32
  }
  func.func @transform_7(%arg0: i32, %arg1: i32) -> (i32, i32, i32) {
    %c0_i32 = arith.constant 0 : i32
    %c0_i32_0 = arith.constant 0 : i32
    %c0_i32_1 = arith.constant 0 : i32
    return %arg1, %c0_i32, %c0_i32_0 : i32, i32, i32
  }
  func.func @transform_8(%arg0: i32, %arg1: i32) -> (i32, i32, i32) {
    %c0_i32 = arith.constant 0 : i32
    %c0_i32_0 = arith.constant 0 : i32
    %c0_i32_1 = arith.constant 0 : i32
    return %arg1, %c0_i32, %c0_i32_0 : i32, i32, i32
  }
  func.func @transform_9(%arg0: i32, %arg1: i32) -> (i32, i32, i32) {
    %c0_i32 = arith.constant 0 : i32
    %c0_i32_0 = arith.constant 0 : i32
    %c0_i32_1 = arith.constant 0 : i32
    return %arg0, %c0_i32, %c0_i32_0 : i32, i32, i32
  }
}

</mosaic_0001>

<llo_original>
// kernel: tpu_custom_call.1
$region0: #{tpu_custom_call.1}
  #allocation0 [shape = 'u32[]', space=smem, size = 0x4, offset = 0x4, fixed_abs, tag = 'smem constant byte address 0x4 - core index']
  #allocation1 [shape = 'u32[72,128]{1,0:T(1,128)}', space=vmem, size = 0x9000, scoped, tag = 'internal scratch']
  %s0 = inlined_call_operand.vmem [shape: f32[8,16,64], index: 0, kind: input, shape index: {}]
  %s1 = inlined_call_operand.hbm [shape: f32[8,1,16], index: 1, kind: input, shape index: {}]
  %s2 = inlined_call_operand.hbm [shape: f32[1,64], index: 2, kind: input, shape index: {}]
  %s3 = inlined_call_operand.hbm [shape: f32[1,64], index: 3, kind: input, shape index: {}]
  %s4 = inlined_call_operand.vmem [shape: bf16[2,64,192], index: 4, kind: input, shape index: {}]
  %s5 = inlined_call_operand.hbm [shape: bf16[2,64,64], index: 5, kind: input, shape index: {}]
  %s6 = inlined_call_operand.vmem [shape: bf16[2,64,256], index: 6, kind: input, shape index: {}]
  %s7 = inlined_call_operand.vmem [shape: bf16[2,256,64], index: 7, kind: input, shape index: {}]
  %s8 = inlined_call_operand.hbm [shape: f32[2,8,256], index: 8, kind: input, shape index: {}]
  %s9 = inlined_call_operand.hbm [shape: f32[8,16,64], index: 9, kind: output, shape index: {}]
  %s10 = sld [smem:[#allocation0]]
  $region93: #{tpu_custom_call.1} parent=0
    _
  %s12 = ssub.s32 1, %s10
  %s13 = scalar_select 0, %s12, %s10
  $region1: #{tpu_custom_call.1} parent=0
    #allocation2 [shape = 'u8[4096]{0}', space=vmem, size = 0x1000, scoped, tag = 'input window, operand 1']
    #allocation3 [shape = 's32[2]{0}', space=sflag, size = 0x8, scoped, tag = 'scoped memory for tpu_custom_call.1']
    #allocation4 [shape = 's32[2]{0}', space=sflag, size = 0x8, scoped, tag = 'scoped memory for tpu_custom_call.1']
    #allocation5 [shape = 'u8[512]{0}', space=vmem, size = 0x400, scoped, tag = 'input window, operand 2, single buffered']
    #allocation6 [shape = 's32[1]{0}', space=sflag, size = 0x4, scoped, tag = 'scoped memory for tpu_custom_call.1']
    #allocation7 [shape = 'u8[512]{0}', space=vmem, size = 0x400, scoped, tag = 'input window, operand 3, single buffered']
    #allocation8 [shape = 'u8[32768]{0}', space=vmem, size = 0x8000, scoped, tag = 'input window, operand 5']
    #allocation9 [shape = 's32[2]{0}', space=sflag, size = 0x8, scoped, tag = 'scoped memory for tpu_custom_call.1']
    #allocation10 [shape = 'u8[16384]{0}', space=vmem, size = 0x4000, scoped, tag = 'input window, operand 8']
    #allocation11 [shape = 'u8[65536]{0}', space=vmem, size = 0x10000, scoped, tag = 'output window, operand 0']
    %14 = vsyncpa [#allocation3], 0
    %s15 = scalar_lea.sflag [#allocation3], 1
    %16 = vsyncpa %s15, 0
    %17 = vsyncpa [#allocation6], 0
    %18 = vsyncpa [#allocation9], 0
    %s19 = scalar_lea.sflag [#allocation9], 1
    %20 = vsyncpa %s19, 0
    %21 = vsyncpa [#allocation4], 0
    %s22 = scalar_lea.sflag [#allocation4], 1
    %23 = vsyncpa %s22, 0
    loop: start=0, step=1, limit=6
    $region2: #{tpu_custom_call.1} parent=1 // loop_pre_header
      _
    $region3: #{tpu_custom_call.1} parent=1 // loop_header
      %s25 = sphi 0, %s29
      %p26 = scmp.ge.s32.totalorder %s25, 6
      %s32 = sphi 0, %s44
      %s33 = sphi 0, %s40
      %s34 = sphi 0, %s32
      %s35 = sphi 0, %s33
      %s36 = sphi 0, %s34
      %s37 = sphi 0, %s35
      %s47 = sphi 0, %s49
      %s50 = sphi 0, %s47
      %s51 = sphi 0, %s50
      %s67 = sphi 0, %s51
      %s73 = sphi 0, %s75
      %s76 = sphi 0, %s73
      %s77 = sphi 0, %s76
      %s93 = sphi 0, %s77
      %s97 = sphi 0, %s97
      %s99 = sphi 0, %s97
      %s100 = sphi 0, %s99
      %s114 = sphi 0, %s100
      %s118 = sphi 0, %s118
      %s120 = sphi 0, %s118
      %s121 = sphi 0, %s120
      %s135 = sphi 0, %s121
      %s141 = sphi 0, %s143
      %s144 = sphi 0, %s141
      %s145 = sphi 0, %s144
      %s161 = sphi 0, %s145
      %s167 = sphi 0, %s169
      %s170 = sphi 0, %s167
      %s171 = sphi 0, %s170
      %s187 = sphi 0, %s171
      %s193 = sphi 0, %s195
      %s196 = sphi 0, %s193
      %s197 = sphi 0, %s196
      %s213 = sphi 0, %s197
      %s219 = sphi 0, %s221
      %s222 = sphi 0, %s219
      %s223 = sphi 0, %s222
      %s239 = sphi 0, %s223
      %s245 = sphi 0, %s247
      %s248 = sphi 0, %s245
      %s249 = sphi 0, %s248
      %s265 = sphi 0, %s249
      %s271 = sphi 0, %s273
      %s274 = sphi 0, %s271
      %s275 = sphi 0, %s274
      %s291 = sphi 0, %s275
    $region4: #{tpu_custom_call.1} parent=1 // loop_header_branch
      %28 = sbr.rel (%p26) target = $region8
    $region5: #{tpu_custom_call.1} parent=1 // loop_body
      %s30 = ssub.s32 %s25, 1
      %s31 = ssub.s32 %s25, 2
      %s38 = sadd.s32 1, %s33
      %p39 = scmp.ge.s32.totalorder %s38, 2
      %s40 = scalar_select %p39, 0, %s38
      %s41 = sadd.s32 1, %s32
      %s42 = scalar_select %p39, %s41, %s32
      %p43 = scmp.ge.s32.totalorder %s42, 2
      %s44 = scalar_select %p43, 0, %s42
      %s45 = ssub.s32 %s32, %s44
      %p46 = scmp.eq.s32.totalorder %s45, 0
      %s48 = sadd.s32 %s47, 1
      %s49 = scalar_select %p46, %s47, %s48
      %p52 = pneg %p46
      %p53 = scmp.eq.s32.totalorder %s25, 3
      %p54 = por %p52, %p53
      %p55 = scmp.ne.s32.totalorder %s47, %s50
      %p56 = scmp.eq.s32.totalorder %s25, 0
      %p57 = por %p55, %p56
      %p58 = scmp.ne.s32.totalorder %s47, %s50
      %p59 = scmp.eq.s32.totalorder %s30, 3
      %p60 = por %p58, %p59
      %p61 = scmp.ne.s32.totalorder %s50, %s51
      %p62 = scmp.eq.s32.totalorder %s30, 0
      %p63 = por %p61, %p62
      %p64 = scmp.ne.s32.totalorder %s50, %s51
      %p65 = scmp.eq.s32.totalorder %s31, 3
      %p66 = por %p64, %p65
      %p68 = scmp.ne.s32.totalorder %s51, %s67
      %p69 = scmp.eq.s32.totalorder %s31, 0
      %p70 = por %p68, %p69
      %s71 = ssub.s32 %s32, %s44
      %p72 = scmp.eq.s32.totalorder %s71, 0
      %s74 = sadd.s32 %s73, 1
      %s75 = scalar_select %p72, %s73, %s74
      %p78 = pneg %p72
      %p79 = scmp.eq.s32.totalorder %s25, 3
      %p80 = por %p78, %p79
      %p81 = scmp.ne.s32.totalorder %s73, %s76
      %p82 = scmp.eq.s32.totalorder %s25, 0
      %p83 = por %p81, %p82
      %p84 = scmp.ne.s32.totalorder %s73, %s76
      %p85 = scmp.eq.s32.totalorder %s30, 3
      %p86 = por %p84, %p85
      %p87 = scmp.ne.s32.totalorder %s76, %s77
      %p88 = scmp.eq.s32.totalorder %s30, 0
      %p89 = por %p87, %p88
      %p90 = scmp.ne.s32.totalorder %s76, %s77
      %p91 = scmp.eq.s32.totalorder %s31, 3
      %p92 = por %p90, %p91
      %p94 = scmp.ne.s32.totalorder %s77, %s93
      %p95 = scmp.eq.s32.totalorder %s31, 0
      %p96 = por %p94, %p95
      %s98 = sadd.s32 %s97, 1
      %p101 = scmp.eq.s32.totalorder %s25, 3
      %p102 = scmp.ne.s32.totalorder %s97, %s99
      %p103 = scmp.eq.s32.totalorder %s25, 0
      %p104 = por %p102, %p103
      %p105 = scmp.ne.s32.totalorder %s97, %s99
      %p106 = scmp.eq.s32.totalorder %s30, 3
      %p107 = por %p105, %p106
      %p108 = scmp.ne.s32.totalorder %s99, %s100
      %p109 = scmp.eq.s32.totalorder %s30, 0
      %p110 = por %p108, %p109
      %p111 = scmp.ne.s32.totalorder %s99, %s100
      %p112 = scmp.eq.s32.totalorder %s31, 3
      %p113 = por %p111, %p112
      %p115 = scmp.ne.s32.totalorder %s100, %s114
      %p116 = scmp.eq.s32.totalorder %s31, 0
      %p117 = por %p115, %p116
      %s119 = sadd.s32 %s118, 1
      %p122 = scmp.eq.s32.totalorder %s25, 3
      %p123 = scmp.ne.s32.totalorder %s118, %s120
      %p124 = scmp.eq.s32.totalorder %s25, 0
      %p125 = por %p123, %p124
      %p126 = scmp.ne.s32.totalorder %s118, %s120
      %p127 = scmp.eq.s32.totalorder %s30, 3
      %p128 = por %p126, %p127
      %p129 = scmp.ne.s32.totalorder %s120, %s121
      %p130 = scmp.eq.s32.totalorder %s30, 0
      %p131 = por %p129, %p130
      %p132 = scmp.ne.s32.totalorder %s120, %s121
      %p133 = scmp.eq.s32.totalorder %s31, 3
      %p134 = por %p132, %p133
      %p136 = scmp.ne.s32.totalorder %s121, %s135
      %p137 = scmp.eq.s32.totalorder %s31, 0
      %p138 = por %p136, %p137
      %s139 = ssub.s32 %s33, %s40
      %p140 = scmp.eq.s32.totalorder %s139, 0
      %s142 = sadd.s32 %s141, 1
      %s143 = scalar_select %p140, %s141, %s142
      %p146 = pneg %p140
      %p147 = scmp.eq.s32.totalorder %s25, 3
      %p148 = por %p146, %p147
      %p149 = scmp.ne.s32.totalorder %s141, %s144
      %p150 = scmp.eq.s32.totalorder %s25, 0
      %p151 = por %p149, %p150
      %p152 = scmp.ne.s32.totalorder %s141, %s144
      %p153 = scmp.eq.s32.totalorder %s30, 3
      %p154 = por %p152, %p153
      %p155 = scmp.ne.s32.totalorder %s144, %s145
      %p156 = scmp.eq.s32.totalorder %s30, 0
      %p157 = por %p155, %p156
      %p158 = scmp.ne.s32.totalorder %s144, %s145
      %p159 = scmp.eq.s32.totalorder %s31, 3
      %p160 = por %p158, %p159
      %p162 = scmp.ne.s32.totalorder %s145, %s161
      %p163 = scmp.eq.s32.totalorder %s31, 0
      %p164 = por %p162, %p163
      %s165 = ssub.s32 %s33, %s40
      %p166 = scmp.eq.s32.totalorder %s165, 0
      %s168 = sadd.s32 %s167, 1
      %s169 = scalar_select %p166, %s167, %s168
      %p172 = pneg %p166
      %p173 = scmp.eq.s32.totalorder %s25, 3
      %p174 = por %p172, %p173
      %p175 = scmp.ne.s32.totalorder %s167, %s170
      %p176 = scmp.eq.s32.totalorder %s25, 0
      %p177 = por %p175, %p176
      %p178 = scmp.ne.s32.totalorder %s167, %s170
      %p179 = scmp.eq.s32.totalorder %s30, 3
      %p180 = por %p178, %p179
      %p181 = scmp.ne.s32.totalorder %s170, %s171
      %p182 = scmp.eq.s32.totalorder %s30, 0
      %p183 = por %p181, %p182
      %p184 = scmp.ne.s32.totalorder %s170, %s171
      %p185 = scmp.eq.s32.totalorder %s31, 3
      %p186 = por %p184, %p185
      %p188 = scmp.ne.s32.totalorder %s171, %s187
      %p189 = scmp.eq.s32.totalorder %s31, 0
      %p190 = por %p188, %p189
      %s191 = ssub.s32 %s33, %s40
      %p192 = scmp.eq.s32.totalorder %s191, 0
      %s194 = sadd.s32 %s193, 1
      %s195 = scalar_select %p192, %s193, %s194
      %p198 = pneg %p192
      %p199 = scmp.eq.s32.totalorder %s25, 3
      %p200 = por %p198, %p199
      %p201 = scmp.ne.s32.totalorder %s193, %s196
      %p202 = scmp.eq.s32.totalorder %s25, 0
      %p203 = por %p201, %p202
      %p204 = scmp.ne.s32.totalorder %s193, %s196
      %p205 = scmp.eq.s32.totalorder %s30, 3
      %p206 = por %p204, %p205
      %p207 = scmp.ne.s32.totalorder %s196, %s197
      %p208 = scmp.eq.s32.totalorder %s30, 0
      %p209 = por %p207, %p208
      %p210 = scmp.ne.s32.totalorder %s196, %s197
      %p211 = scmp.eq.s32.totalorder %s31, 3
      %p212 = por %p210, %p211
      %p214 = scmp.ne.s32.totalorder %s197, %s213
      %p215 = scmp.eq.s32.totalorder %s31, 0
      %p216 = por %p214, %p215
      %s217 = ssub.s32 %s33, %s40
      %p218 = scmp.eq.s32.totalorder %s217, 0
      %s220 = sadd.s32 %s219, 1
      %s221 = scalar_select %p218, %s219, %s220
      %p224 = pneg %p218
      %p225 = scmp.eq.s32.totalorder %s25, 3
      %p226 = por %p224, %p225
      %p227 = scmp.ne.s32.totalorder %s219, %s222
      %p228 = scmp.eq.s32.totalorder %s25, 0
      %p229 = por %p227, %p228
      %p230 = scmp.ne.s32.totalorder %s219, %s222
      %p231 = scmp.eq.s32.totalorder %s30, 3
      %p232 = por %p230, %p231
      %p233 = scmp.ne.s32.totalorder %s222, %s223
      %p234 = scmp.eq.s32.totalorder %s30, 0
      %p235 = por %p233, %p234
      %p236 = scmp.ne.s32.totalorder %s222, %s223
      %p237 = scmp.eq.s32.totalorder %s31, 3
      %p238 = por %p236, %p237
      %p240 = scmp.ne.s32.totalorder %s223, %s239
      %p241 = scmp.eq.s32.totalorder %s31, 0
      %p242 = por %p240, %p241
      %s243 = ssub.s32 %s33, %s40
      %p244 = scmp.eq.s32.totalorder %s243, 0
      %s246 = sadd.s32 %s245, 1
      %s247 = scalar_select %p244, %s245, %s246
      %p250 = pneg %p244
      %p251 = scmp.eq.s32.totalorder %s25, 3
      %p252 = por %p250, %p251
      %p253 = scmp.ne.s32.totalorder %s245, %s248
      %p254 = scmp.eq.s32.totalorder %s25, 0
      %p255 = por %p253, %p254
      %p256 = scmp.ne.s32.totalorder %s245, %s248
      %p257 = scmp.eq.s32.totalorder %s30, 3
      %p258 = por %p256, %p257
      %p259 = scmp.ne.s32.totalorder %s248, %s249
      %p260 = scmp.eq.s32.totalorder %s30, 0
      %p261 = por %p259, %p260
      %p262 = scmp.ne.s32.totalorder %s248, %s249
      %p263 = scmp.eq.s32.totalorder %s31, 3
      %p264 = por %p262, %p263
      %p266 = scmp.ne.s32.totalorder %s249, %s265
      %p267 = scmp.eq.s32.totalorder %s31, 0
      %p268 = por %p266, %p267
      %s269 = ssub.s32 %s32, %s44
      %p270 = scmp.eq.s32.totalorder %s269, 0
      %s272 = sadd.s32 %s271, 1
      %s273 = scalar_select %p270, %s271, %s272
      %p276 = pneg %p270
      %p277 = scmp.eq.s32.totalorder %s25, 3
      %p278 = por %p276, %p277
      %p279 = scmp.ne.s32.totalorder %s271, %s274
      %p280 = scmp.eq.s32.totalorder %s25, 0
      %p281 = por %p279, %p280
      %p282 = scmp.ne.s32.totalorder %s271, %s274
      %p283 = scmp.eq.s32.totalorder %s30, 3
      %p284 = por %p282, %p283
      %p285 = scmp.ne.s32.totalorder %s274, %s275
      %p286 = scmp.eq.s32.totalorder %s30, 0
      %p287 = por %p285, %p286
      %p288 = scmp.ne.s32.totalorder %s274, %s275
      %p289 = scmp.eq.s32.totalorder %s31, 3
      %p290 = por %p288, %p289
      %p292 = scmp.ne.s32.totalorder %s275, %s291
      %p293 = scmp.eq.s32.totalorder %s31, 0
      %p294 = por %p292, %p293
      %p295 = scmp.le.s32.totalorder 1, %s25
      %p296 = scmp.lt.s32.totalorder %s25, 5
      %p297 = pnand %p295, %p296
      %p298 = pneg %p297
      // Predicated region
      $region9: #{tpu_custom_call.1} parent=5 // pred_check
        _
      $region10: #{tpu_custom_call.1} parent=5 // pred_check_branch
        %300 = sbr.rel (%p297) target = $region12
      $region11: #{tpu_custom_call.1} parent=5 // pred_region
        %s301 = ssub.s32 %s25, 1
        // Predicated region
        $region13: #{tpu_custom_call.1} parent=11 // pred_check
          %p302 = pneg %p110
        $region14: #{tpu_custom_call.1} parent=11 // pred_check_branch
          %304 = sbr.rel (%p302) target = $region16
        $region15: #{tpu_custom_call.1} parent=11 // pred_region
          %306 = vsyncadd [#allocation6], 0
          %s308 = sshll.u32 %s2, 4
          %s309 = int_to_ptr.hbm [resolvable:$true] %s308
          %s310 = sshll.u32 [#allocation5], 4
          %s311 = int_to_ptr.vmem [resolvable:$true] %s310
          %313 = dma.hbm_to_vmem [thread:$0]  %s309, 16, %s311, [#allocation6]
        $region16: #{tpu_custom_call.1} parent=11 // pred_fallthru
          _
        // Predicated region
        $region17: #{tpu_custom_call.1} parent=11 // pred_check
          %p314 = pneg %p131
        $region18: #{tpu_custom_call.1} parent=11 // pred_check_branch
          %316 = sbr.rel (%p314) target = $region20
        $region19: #{tpu_custom_call.1} parent=11 // pred_region
          %318 = vsyncadd [#allocation6], 0
          %s320 = sshll.u32 %s3, 4
          %s321 = int_to_ptr.hbm [resolvable:$true] %s320
          %s322 = sshll.u32 [#allocation7], 4
          %s323 = int_to_ptr.vmem [resolvable:$true] %s322
          %325 = dma.hbm_to_vmem [thread:$0]  %s321, 16, %s323, [#allocation6]
        $region20: #{tpu_custom_call.1} parent=11 // pred_fallthru
          _
      $region12: #{tpu_custom_call.1} parent=5 // pred_fallthru
        _
      %p326 = scmp.lt.s32.totalorder %s25, 4
      // Predicated region
      $region21: #{tpu_custom_call.1} parent=5 // pred_check
        %p327 = pneg %p326
      $region22: #{tpu_custom_call.1} parent=5 // pred_check_branch
        %329 = sbr.rel (%p327) target = $region24
      $region23: #{tpu_custom_call.1} parent=5 // pred_region
        // Predicated region
        $region25: #{tpu_custom_call.1} parent=23 // pred_check
          %p330 = pneg %p57
        $region26: #{tpu_custom_call.1} parent=23 // pred_check_branch
          %332 = sbr.rel (%p330) target = $region28
        $region27: #{tpu_custom_call.1} parent=23 // pred_region
          %s333 = smul.u32 4, %s32
          %p334 = scmp.lt.s32.totalorder %s333, 7
          %s335 = scalar_select %p334, %s333, 7
          %s336 = smul.addr %s335, 2
          %s337 = smul.addr %s336, 8
          %s338 = scalar_lea.vmem %s0, %s337
          %s339 = smul.u32 4, %s32
        $region28: #{tpu_custom_call.1} parent=23 // pred_fallthru
          _
        // Predicated region
        $region29: #{tpu_custom_call.1} parent=23 // pred_check
          %p340 = pneg %p83
        $region30: #{tpu_custom_call.1} parent=23 // pred_check_branch
          %342 = sbr.rel (%p340) target = $region32
        $region31: #{tpu_custom_call.1} parent=23 // pred_region
          %s343 = sand.u32 %s73, 1
          %s344 = scalar_lea.sflag [#allocation3], %s343
          %s345 = sand.u32 %s73, 1
          %s346 = smul.addr %s345, 4
          %s347 = scalar_lea.vmem [#allocation2], %s346
          %s348 = smul.u32 4, %s32
          %350 = vsyncadd %s344, 0
          %s351 = scalar_lea.hbm %s1, %s348
          %s352 = sshll.u32 %s351, 4
          %s353 = int_to_ptr.hbm [resolvable:$true] %s352
          %s354 = sshll.u32 %s347, 4
          %s355 = int_to_ptr.vmem [resolvable:$true] %s354
          %360 = dma.hbm_to_vmem [thread:$0]  %s353, 64, %s355, %s344, 16, 16, 1
        $region32: #{tpu_custom_call.1} parent=23 // pred_fallthru
          _
        // Predicated region
        $region33: #{tpu_custom_call.1} parent=23 // pred_check
          %p361 = pneg %p151
        $region34: #{tpu_custom_call.1} parent=23 // pred_check_branch
          %363 = sbr.rel (%p361) target = $region36
        $region35: #{tpu_custom_call.1} parent=23 // pred_region
          %p364 = scmp.lt.s32.totalorder %s33, 1
          %s365 = scalar_select %p364, %s33, 1
          %s366 = smul.addr %s365, 16
          %s367 = smul.addr %s366, 4
          %s368 = scalar_lea.vmem %s4, %s367
        $region36: #{tpu_custom_call.1} parent=23 // pred_fallthru
          _
        // Predicated region
        $region37: #{tpu_custom_call.1} parent=23 // pred_check
          %p369 = pneg %p177
        $region38: #{tpu_custom_call.1} parent=23 // pred_check_branch
          %371 = sbr.rel (%p369) target = $region40
        $region39: #{tpu_custom_call.1} parent=23 // pred_region
          %s372 = sand.u32 %s25, 1
          %s373 = scalar_lea.sflag [#allocation9], %s372
          %s374 = sand.u32 %s167, 1
          %s375 = smul.addr %s374, 32
          %s376 = scalar_lea.vmem [#allocation8], %s375
          %378 = vsyncadd %s373, 0
          %s379 = smul.addr %s33, 8
          %s380 = smul.addr %s379, 4
          %s381 = scalar_lea.hbm %s5, %s380
          %s382 = sshll.u32 %s381, 4
          %s383 = int_to_ptr.hbm [resolvable:$true] %s382
          %s384 = sshll.u32 %s376, 4
          %s385 = int_to_ptr.vmem [resolvable:$true] %s384
          %390 = dma.hbm_to_vmem [thread:$0]  %s383, 512, %s385, %s373, 64, 64, 4
        $region40: #{tpu_custom_call.1} parent=23 // pred_fallthru
          _
        // Predicated region
        $region41: #{tpu_custom_call.1} parent=23 // pred_check
          %p391 = pneg %p203
        $region42: #{tpu_custom_call.1} parent=23 // pred_check_branch
          %393 = sbr.rel (%p391) target = $region44
        $region43: #{tpu_custom_call.1} parent=23 // pred_region
          %p394 = scmp.lt.s32.totalorder %s33, 1
          %s395 = scalar_select %p394, %s33, 1
          %s396 = smul.addr %s395, 16
          %s397 = smul.addr %s396, 4
          %s398 = scalar_lea.vmem %s6, %s397
        $region44: #{tpu_custom_call.1} parent=23 // pred_fallthru
          _
        // Predicated region
        $region45: #{tpu_custom_call.1} parent=23 // pred_check
          %p399 = pneg %p229
        $region46: #{tpu_custom_call.1} parent=23 // pred_check_branch
          %401 = sbr.rel (%p399) target = $region48
        $region47: #{tpu_custom_call.1} parent=23 // pred_region
          %p402 = scmp.lt.s32.totalorder %s33, 1
          %s403 = scalar_select %p402, %s33, 1
          %s404 = smul.addr %s403, 32
          %s405 = smul.addr %s404, 4
          %s406 = scalar_lea.vmem %s7, %s405
        $region48: #{tpu_custom_call.1} parent=23 // pred_fallthru
          _
        // Predicated region
        $region49: #{tpu_custom_call.1} parent=23 // pred_check
          %p407 = pneg %p255
        $region50: #{tpu_custom_call.1} parent=23 // pred_check_branch
          %409 = sbr.rel (%p407) target = $region52
        $region51: #{tpu_custom_call.1} parent=23 // pred_region
          %s410 = sand.u32 %s25, 1
          %s411 = scalar_lea.sflag [#allocation9], %s410
          %s412 = sand.u32 %s245, 1
          %s413 = smul.addr %s412, 16
          %s414 = scalar_lea.vmem [#allocation10], %s413
          %416 = vsyncadd %s411, 0
          %s417 = smul.addr %s33, 2
          %s418 = smul.addr %s417, 8
          %s419 = scalar_lea.hbm %s8, %s418
          %s421 = sshll.u32 %s419, 4
          %s422 = int_to_ptr.hbm [resolvable:$true] %s421
          %s423 = sshll.u32 %s414, 4
          %s424 = int_to_ptr.vmem [resolvable:$true] %s423
          %426 = dma.hbm_to_vmem [thread:$0]  %s422, 256, %s424, %s411
        $region52: #{tpu_custom_call.1} parent=23 // pred_fallthru
          _
      $region24: #{tpu_custom_call.1} parent=5 // pred_fallthru
        _
      %p427 = scmp.le.s32.totalorder 1, %s25
      %p428 = scmp.lt.s32.totalorder %s25, 5
      %p429 = pnand %p427, %p428
      %p430 = pneg %p429
      // Predicated region
      $region53: #{tpu_custom_call.1} parent=5 // pred_check
        _
      $region54: #{tpu_custom_call.1} parent=5 // pred_check_branch
        %432 = sbr.rel (%p429) target = $region56
      $region55: #{tpu_custom_call.1} parent=5 // pred_region
        %s433 = ssub.s32 %s25, 1
        %s434 = sand.u32 %s76, 1
        %s435 = scalar_lea.sflag [#allocation3], %s434
        %s436 = sand.u32 %s76, 1
        %s437 = smul.addr %s436, 4
        %s438 = scalar_lea.vmem [#allocation2], %s437
        // Predicated region
        $region57: #{tpu_custom_call.1} parent=55 // pred_check
          %p439 = pneg %p89
        $region58: #{tpu_custom_call.1} parent=55 // pred_check_branch
          %441 = sbr.rel (%p439) target = $region60
        $region59: #{tpu_custom_call.1} parent=55 // pred_region
          %443 = dma.done %s435, 64
        $region60: #{tpu_custom_call.1} parent=55 // pred_fallthru
          _
        // Predicated region
        $region61: #{tpu_custom_call.1} parent=55 // pred_check
          %p444 = pneg %p110
        $region62: #{tpu_custom_call.1} parent=55 // pred_check_branch
          %446 = sbr.rel (%p444) target = $region64
        $region63: #{tpu_custom_call.1} parent=55 // pred_region
          %448 = dma.done [#allocation6], 16
        $region64: #{tpu_custom_call.1} parent=55 // pred_fallthru
          _
        // Predicated region
        $region65: #{tpu_custom_call.1} parent=55 // pred_check
          %p449 = pneg %p131
        $region66: #{tpu_custom_call.1} parent=55 // pred_check_branch
          %451 = sbr.rel (%p449) target = $region68
        $region67: #{tpu_custom_call.1} parent=55 // pred_region
          %453 = dma.done [#allocation6], 16
        $region68: #{tpu_custom_call.1} parent=55 // pred_fallthru
          _
        %s454 = sand.u32 %s30, 1
        %s455 = scalar_lea.sflag [#allocation9], %s454
        %s456 = sand.u32 %s170, 1
        %s457 = smul.addr %s456, 32
        %s458 = scalar_lea.vmem [#allocation8], %s457
        // Predicated region
        $region69: #{tpu_custom_call.1} parent=55 // pred_check
          %p459 = pneg %p183
        $region70: #{tpu_custom_call.1} parent=55 // pred_check_branch
          %461 = sbr.rel (%p459) target = $region72
        $region71: #{tpu_custom_call.1} parent=55 // pred_region
          %463 = dma.done %s455, 512
        $region72: #{tpu_custom_call.1} parent=55 // pred_fallthru
          _
        %s464 = sand.u32 %s30, 1
        %s465 = scalar_lea.sflag [#allocation9], %s464
        %s466 = sand.u32 %s248, 1
        %s467 = smul.addr %s466, 16
        %s468 = scalar_lea.vmem [#allocation10], %s467
        // Predicated region
        $region73: #{tpu_custom_call.1} parent=55 // pred_check
          %p469 = pneg %p261
        $region74: #{tpu_custom_call.1} parent=55 // pred_check_branch
          %471 = sbr.rel (%p469) target = $region76
        $region75: #{tpu_custom_call.1} parent=55 // pred_region
          %473 = dma.done %s465, 256
        $region76: #{tpu_custom_call.1} parent=55 // pred_fallthru
          _
        %s474 = smul.u32 4, %s34
        %p475 = scmp.lt.s32.totalorder %s474, 7
        %s476 = scalar_select %p475, %s474, 7
        %s477 = smul.addr %s476, 2
        %s478 = smul.addr %s477, 8
        %s479 = scalar_lea.vmem %s0, %s478
        %p480 = pneg %p63
        %p481 = pneg %p60
        %s482 = sand.u32 %s76, 1
        %s483 = scalar_lea.sflag [#allocation3], %s482
        %s484 = sand.u32 %s76, 1
        %s485 = smul.addr %s484, 4
        %s486 = scalar_lea.vmem [#allocation2], %s485
        %p487 = pneg %p89
        %p488 = pneg %p86
        %p489 = pneg %p110
        %p490 = pneg %p107
        %p491 = pneg %p131
        %p492 = pneg %p128
        %p493 = scmp.lt.s32.totalorder %s35, 1
        %s494 = scalar_select %p493, %s35, 1
        %s495 = smul.addr %s494, 16
        %s496 = smul.addr %s495, 4
        %s497 = scalar_lea.vmem %s4, %s496
        %p498 = pneg %p157
        %p499 = pneg %p154
        %s500 = sand.u32 %s30, 1
        %s501 = scalar_lea.sflag [#allocation9], %s500
        %s502 = sand.u32 %s170, 1
        %s503 = smul.addr %s502, 32
        %s504 = scalar_lea.vmem [#allocation8], %s503
        %p505 = pneg %p183
        %p506 = pneg %p180
        %p507 = scmp.lt.s32.totalorder %s35, 1
        %s508 = scalar_select %p507, %s35, 1
        %s509 = smul.addr %s508, 16
        %s510 = smul.addr %s509, 4
        %s511 = scalar_lea.vmem %s6, %s510
        %p512 = pneg %p209
        %p513 = pneg %p206
        %p514 = scmp.lt.s32.totalorder %s35, 1
        %s515 = scalar_select %p514, %s35, 1
        %s516 = smul.addr %s515, 32
        %s517 = smul.addr %s516, 4
        %s518 = scalar_lea.vmem %s7, %s517
        %p519 = pneg %p235
        %p520 = pneg %p232
        %s521 = sand.u32 %s30, 1
        %s522 = scalar_lea.sflag [#allocation9], %s521
        %s523 = sand.u32 %s248, 1
        %s524 = smul.addr %s523, 16
        %s525 = scalar_lea.vmem [#allocation10], %s524
        %p526 = pneg %p261
        %p527 = pneg %p258
        %p528 = pneg %p287
        %p529 = pneg %p284
        %s530 = sand.u32 %s274, 1
        %s531 = scalar_lea.sflag [#allocation4], %s530
        %s532 = sand.u32 %s274, 1
        %s533 = smul.addr %s532, 64
        %s534 = scalar_lea.vmem [#allocation11], %s533
        %s535 = smul.u32 4, %s34
        %p536 = scmp.lt.s32.totalorder %s535, 7
        %s537 = scalar_select %p536, %s535, 7
        %s538 = smul.addr %s537, 2
        %s539 = smul.addr %s538, 8
        %s540 = scalar_lea.vmem %s0, %s539
        %s541 = smul.u32 4, %s34
        %s542 = smul.u32 4, %s34
        %p543 = scmp.lt.s32.totalorder %s35, 1
        %s544 = scalar_select %p543, %s35, 1
        %s545 = smul.addr %s544, 16
        %s546 = smul.addr %s545, 4
        %s547 = scalar_lea.vmem %s4, %s546
        %p548 = scmp.lt.s32.totalorder %s35, 1
        %s549 = scalar_select %p548, %s35, 1
        %s550 = smul.addr %s549, 16
        %s551 = smul.addr %s550, 4
        %s552 = scalar_lea.vmem %s6, %s551
        %p553 = scmp.lt.s32.totalorder %s35, 1
        %s554 = scalar_select %p553, %s35, 1
        %s555 = smul.addr %s554, 32
        %s556 = smul.addr %s555, 4
        %s557 = scalar_lea.vmem %s7, %s556
        %s558 = smul.u32 4, %s34
        %p560 = scmp.eq.s32.totalorder %s35, 0
        // Predicated region
        $region77: #{tpu_custom_call.1} parent=55 // pred_check
          %p561 = pneg %p560
        $region78: #{tpu_custom_call.1} parent=55 // pred_check_branch
          %563 = sbr.rel (%p561) target = $region80
        $region79: #{tpu_custom_call.1} parent=55 // pred_region
          %v564 = vld [vmem:[%s540] sm:$0xff]
          %v565 = vld [vmem:[%s540 + $0x8] sm:$0xff]
          %v566 = vld [vmem:[%s540 + $0x10] sm:$0xff]
          %v567 = vld [vmem:[%s540 + $0x18] sm:$0xff]
          %v568 = vld [vmem:[%s540 + $0x20] sm:$0xff]
          %v569 = vld [vmem:[%s540 + $0x28] sm:$0xff]
          %v570 = vld [vmem:[%s540 + $0x30] sm:$0xff]
          %v571 = vld [vmem:[%s540 + $0x38] sm:$0xff]
          %v572 = vld [vmem:[#allocation5] sm:$0x1]
          %v573 = vld [vmem:[#allocation7] sm:$0x1]
          %vm574 = vcmask 523264
          %v575 = vsel %vm574, %v564, 0.0
          %576 = vadd.xlane.f32.xlu0 %v575
          %v577 = vpop.xlane.xlu0 %576
          %v578 = vsel %vm574, %v565, 0.0
          %579 = vadd.xlane.f32.xlu0 %v578
          %v580 = vpop.xlane.xlu0 %579
          %v581 = vsel %vm574, %v566, 0.0
          %582 = vadd.xlane.f32.xlu0 %v581
          %v583 = vpop.xlane.xlu0 %582
          %v584 = vsel %vm574, %v567, 0.0
          %585 = vadd.xlane.f32.xlu0 %v584
          %v586 = vpop.xlane.xlu0 %585
          %v587 = vsel %vm574, %v568, 0.0
          %588 = vadd.xlane.f32.xlu0 %v587
          %v589 = vpop.xlane.xlu0 %588
          %v590 = vsel %vm574, %v569, 0.0
          %591 = vadd.xlane.f32.xlu0 %v590
          %v592 = vpop.xlane.xlu0 %591
          %v593 = vsel %vm574, %v570, 0.0
          %594 = vadd.xlane.f32.xlu0 %v593
          %v595 = vpop.xlane.xlu0 %594
          %v596 = vsel %vm574, %v571, 0.0
          %597 = vadd.xlane.f32.xlu0 %v596
          %v598 = vpop.xlane.xlu0 %597
          %v599 = vrcp.pop 64.0
          %v600 = vmul.f32 64.0, %v599
          %v601 = vsub.f32 1.0, %v600
          %v602 = vmul.f32 %v599, %v601
          %v603 = vadd.f32 %v599, %v602
          %vm604 = vweird.f32 %v599
          %v605 = vsel %vm604, %v599, %v603
          %v606 = vmul.f32 %v577, %v605
          %v607 = vmul.f32 %v580, %v605
          %v608 = vmul.f32 %v583, %v605
          %v609 = vmul.f32 %v586, %v605
          %v610 = vmul.f32 %v589, %v605
          %v611 = vmul.f32 %v592, %v605
          %v612 = vmul.f32 %v595, %v605
          %v613 = vmul.f32 %v598, %v605
          %v614 = vsub.f32 %v564, %v606
          %v615 = vsub.f32 %v565, %v607
          %v616 = vsub.f32 %v566, %v608
          %v617 = vsub.f32 %v567, %v609
          %v618 = vsub.f32 %v568, %v610
          %v619 = vsub.f32 %v569, %v611
          %v620 = vsub.f32 %v570, %v612
          %v621 = vsub.f32 %v571, %v613
          %v622 = vmul.f32 %v614, %v614
          %v623 = vmul.f32 %v615, %v615
          %v624 = vmul.f32 %v616, %v616
          %v625 = vmul.f32 %v617, %v617
          %v626 = vmul.f32 %v618, %v618
          %v627 = vmul.f32 %v619, %v619
          %v628 = vmul.f32 %v620, %v620
          %v629 = vmul.f32 %v621, %v621
          %v630 = vsel %vm574, %v622, 0.0
          %631 = vadd.xlane.f32.xlu0 %v630
          %v632 = vpop.xlane.xlu0 %631
          %v633 = vsel %vm574, %v623, 0.0
          %634 = vadd.xlane.f32.xlu0 %v633
          %v635 = vpop.xlane.xlu0 %634
          %v636 = vsel %vm574, %v624, 0.0
          %637 = vadd.xlane.f32.xlu0 %v636
          %v638 = vpop.xlane.xlu0 %637
          %v639 = vsel %vm574, %v625, 0.0
          %640 = vadd.xlane.f32.xlu0 %v639
          %v641 = vpop.xlane.xlu0 %640
          %v642 = vsel %vm574, %v626, 0.0
          %643 = vadd.xlane.f32.xlu0 %v642
          %v644 = vpop.xlane.xlu0 %643
          %v645 = vsel %vm574, %v627, 0.0
          %646 = vadd.xlane.f32.xlu0 %v645
          %v647 = vpop.xlane.xlu0 %646
          %v648 = vsel %vm574, %v628, 0.0
          %649 = vadd.xlane.f32.xlu0 %v648
          %v650 = vpop.xlane.xlu0 %649
          %v651 = vsel %vm574, %v629, 0.0
          %652 = vadd.xlane.f32.xlu0 %v651
          %v653 = vpop.xlane.xlu0 %652
          %v654 = vmul.f32 %v632, %v605
          %v655 = vmul.f32 %v635, %v605
          %v656 = vmul.f32 %v638, %v605
          %v657 = vmul.f32 %v641, %v605
          %v658 = vmul.f32 %v644, %v605
          %v659 = vmul.f32 %v647, %v605
          %v660 = vmul.f32 %v650, %v605
          %v661 = vmul.f32 %v653, %v605
          %v662 = vadd.f32 %v654, 1e-12
          %v663 = vadd.f32 %v655, 1e-12
          %v664 = vadd.f32 %v656, 1e-12
          %v665 = vadd.f32 %v657, 1e-12
          %v666 = vadd.f32 %v658, 1e-12
          %v667 = vadd.f32 %v659, 1e-12
          %v668 = vadd.f32 %v660, 1e-12
          %v669 = vadd.f32 %v661, 1e-12
          %v670 = vrsqrt.pop %v662
          %v671 = vmul.f32 %v670, %v662
          %v672 = vmul.f32 %v671, %v670
          %v673 = vmul.f32 0.5, %v672
          %v674 = vsub.f32 1.5, %v673
          %v675 = vmul.f32 %v670, %v674
          %vm676 = vweird.f32 %v662
          %vm677 = vweird.f32 %v670
          %vm678 = vmor %vm676, %vm677
          %v679 = vsel %vm678, %v670, %v675
          %v680 = vrsqrt.pop %v663
          %v681 = vmul.f32 %v680, %v663
          %v682 = vmul.f32 %v681, %v680
          %v683 = vmul.f32 0.5, %v682
          %v684 = vsub.f32 1.5, %v683
          %v685 = vmul.f32 %v680, %v684
          %vm686 = vweird.f32 %v663
          %vm687 = vweird.f32 %v680
          %vm688 = vmor %vm686, %vm687
          %v689 = vsel %vm688, %v680, %v685
          %v690 = vrsqrt.pop %v664
          %v691 = vmul.f32 %v690, %v664
          %v692 = vmul.f32 %v691, %v690
          %v693 = vmul.f32 0.5, %v692
          %v694 = vsub.f32 1.5, %v693
          %v695 = vmul.f32 %v690, %v694
          %vm696 = vweird.f32 %v664
          %vm697 = vweird.f32 %v690
          %vm698 = vmor %vm696, %vm697
          %v699 = vsel %vm698, %v690, %v695
          %v700 = vrsqrt.pop %v665
          %v701 = vmul.f32 %v700, %v665
          %v702 = vmul.f32 %v701, %v700
          %v703 = vmul.f32 0.5, %v702
          %v704 = vsub.f32 1.5, %v703
          %v705 = vmul.f32 %v700, %v704
          %vm706 = vweird.f32 %v665
          %vm707 = vweird.f32 %v700
          %vm708 = vmor %vm706, %vm707
          %v709 = vsel %vm708, %v700, %v705
          %v710 = vrsqrt.pop %v666
          %v711 = vmul.f32 %v710, %v666
          %v712 = vmul.f32 %v711, %v710
          %v713 = vmul.f32 0.5, %v712
          %v714 = vsub.f32 1.5, %v713
          %v715 = vmul.f32 %v710, %v714
          %vm716 = vweird.f32 %v666
          %vm717 = vweird.f32 %v710
          %vm718 = vmor %vm716, %vm717
          %v719 = vsel %vm718, %v710, %v715
          %v720 = vrsqrt.pop %v667
          %v721 = vmul.f32 %v720, %v667
          %v722 = vmul.f32 %v721, %v720
          %v723 = vmul.f32 0.5, %v722
          %v724 = vsub.f32 1.5, %v723
          %v725 = vmul.f32 %v720, %v724
          %vm726 = vweird.f32 %v667
          %vm727 = vweird.f32 %v720
          %vm728 = vmor %vm726, %vm727
          %v729 = vsel %vm728, %v720, %v725
          %v730 = vrsqrt.pop %v668
          %v731 = vmul.f32 %v730, %v668
          %v732 = vmul.f32 %v731, %v730
          %v733 = vmul.f32 0.5, %v732
          %v734 = vsub.f32 1.5, %v733
          %v735 = vmul.f32 %v730, %v734
          %vm736 = vweird.f32 %v668
          %vm737 = vweird.f32 %v730
          %vm738 = vmor %vm736, %vm737
          %v739 = vsel %vm738, %v730, %v735
          %v740 = vrsqrt.pop %v669
          %v741 = vmul.f32 %v740, %v669
          %v742 = vmul.f32 %v741, %v740
          %v743 = vmul.f32 0.5, %v742
          %v744 = vsub.f32 1.5, %v743
          %v745 = vmul.f32 %v740, %v744
          %vm746 = vweird.f32 %v669
          %vm747 = vweird.f32 %v740
          %vm748 = vmor %vm746, %vm747
          %v749 = vsel %vm748, %v740, %v745
          %v750 = vmul.f32 %v614, %v679
          %v751 = vmul.f32 %v615, %v689
          %v752 = vmul.f32 %v616, %v699
          %v753 = vmul.f32 %v617, %v709
          %v754 = vmul.f32 %v618, %v719
          %v755 = vmul.f32 %v619, %v729
          %v756 = vmul.f32 %v620, %v739
          %v757 = vmul.f32 %v621, %v749
          %v759 = vperm.slane %v572, 0
          %v761 = vmul.f32 %v750, %v759
          %v762 = vmul.f32 %v751, %v759
          %v763 = vmul.f32 %v752, %v759
          %v764 = vmul.f32 %v753, %v759
          %v765 = vmul.f32 %v754, %v759
          %v766 = vmul.f32 %v755, %v759
          %v767 = vmul.f32 %v756, %v759
          %v768 = vmul.f32 %v757, %v759
          %v770 = vperm.slane %v573, 0
          %v772 = vadd.f32 %v761, %v770
          %v773 = vadd.f32 %v762, %v770
          %v774 = vadd.f32 %v763, %v770
          %v775 = vadd.f32 %v764, %v770
          %v776 = vadd.f32 %v765, %v770
          %v777 = vadd.f32 %v766, %v770
          %v778 = vadd.f32 %v767, %v770
          %v779 = vadd.f32 %v768, %v770
          %780 = vst.msk [vmem:[%s534] sm:$0xff] %vm574, %v772
          %781 = vst.msk [vmem:[%s534 + $0x8] sm:$0xff] %vm574, %v773
          %782 = vst.msk [vmem:[%s534 + $0x10] sm:$0xff] %vm574, %v774
          %783 = vst.msk [vmem:[%s534 + $0x18] sm:$0xff] %vm574, %v775
          %784 = vst.msk [vmem:[%s534 + $0x20] sm:$0xff] %vm574, %v776
          %785 = vst.msk [vmem:[%s534 + $0x28] sm:$0xff] %vm574, %v777
          %786 = vst.msk [vmem:[%s534 + $0x30] sm:$0xff] %vm574, %v778
          %787 = vst.msk [vmem:[%s534 + $0x38] sm:$0xff] %vm574, %v779
        $region80: #{tpu_custom_call.1} parent=55 // pred_fallthru
          _
        %v788 = vld [vmem:[%s468] sm:$0xff]
        %v789 = vld [vmem:[%s468 + $0x8] sm:$0xff]
        %v790 = vld [vmem:[%s534] sm:$0xff]
        %v791 = vld [vmem:[%s534 + $0x8] sm:$0xff]
        %v792 = vld [vmem:[%s534 + $0x10] sm:$0xff]
        %v793 = vld [vmem:[%s534 + $0x18] sm:$0xff]
        %v794 = vld [vmem:[%s534 + $0x20] sm:$0xff]
        %v795 = vld [vmem:[%s534 + $0x28] sm:$0xff]
        %v796 = vld [vmem:[%s534 + $0x30] sm:$0xff]
        %v797 = vld [vmem:[%s534 + $0x38] sm:$0xff]
        %v798 = vpack.c.bf16 %v791, %v790
        %v799 = vpack.c.bf16 %v793, %v792
        %v800 = vpack.c.bf16 %v795, %v794
        %v801 = vpack.c.bf16 %v797, %v796
        %v802 = vld [vmem:[%s547] sm:$0xff]
        %v803 = vld [vmem:[%s547 + $0x8] sm:$0xff]
        %v804 = vld [vmem:[%s547 + $0x10] sm:$0xff]
        %v805 = vld [vmem:[%s547 + $0x18] sm:$0xff]
        %v806 = vld [vmem:[%s547 + $0x20] sm:$0xff]
        %v807 = vld [vmem:[%s547 + $0x28] sm:$0xff]
        %v808 = vld [vmem:[%s547 + $0x30] sm:$0xff]
        %v809 = vld [vmem:[%s547 + $0x38] sm:$0xff]
        %v810 = vperm.slane %v788, 0
        %v811 = vperm.slane %v789, 0
        %v820 = vunpack.c.l.b16 %v802
        %v821 = vunpack.c.h.b16 %v802
        %v822 = vunpack.c.l.b16 %v803
        %v823 = vunpack.c.h.b16 %v803
        %v824 = vunpack.c.l.b16 %v804
        %v825 = vunpack.c.h.b16 %v804
        %v826 = vunpack.c.l.b16 %v805
        %v827 = vunpack.c.h.b16 %v805
        %v828 = vunpack.c.l.b16 %v806
        %v829 = vunpack.c.h.b16 %v806
        %v830 = vunpack.c.l.b16 %v807
        %v831 = vunpack.c.h.b16 %v807
        %v832 = vunpack.c.l.b16 %v808
        %v833 = vunpack.c.h.b16 %v808
        %v834 = vunpack.c.l.b16 %v809
        %v835 = vunpack.c.h.b16 %v809
        %v836 = vpack.c.b16 %v822, %v820
        %v837 = vpack.c.b16 %v823, %v821
        %v838 = vpack.c.b16 %v826, %v824
        %v839 = vpack.c.b16 %v827, %v825
        %v840 = vpack.c.b16 %v830, %v828
        %v841 = vpack.c.b16 %v831, %v829
        %v842 = vpack.c.b16 %v834, %v832
        %v843 = vpack.c.b16 %v835, %v833
        %vm852 = vcmask 523264
        %v854 = vsel %vm852, %v798, 0
        %v857 = vsel %vm852, %v799, 0
        %v860 = vsel %vm852, %v800, 0
        %v863 = vsel %vm852, %v801, 0
        %865 = vmatpush.bf16.msra.mxu0 0
        %866 = vmatpush.bf16.msra.mxu0 0
        %867 = vmatpush.bf16.msra.mxu0 0
        %868 = vmatpush.bf16.msra.mxu0 0
        %869 = vmatpush.bf16.msra.mxu0 %v842
        %870 = vmatpush.bf16.msra.mxu0 %v840
        %871 = vmatpush.bf16.msra.mxu0 %v838
        %872 = vmatpush.bf16.msra.mxu0 %v836
        %873 = vmatmul.bf16.gmra.mxu0 %v854
        %v874 = vpop.f32.mrf.mxu0
        %v875 = vadd.f32 %v810, %v874
        %v876 = vpop.f32.mrf.mxu0
        %v877 = vadd.f32 %v810, %v876
        %878 = vmatmul.bf16.gmra.mxu0 %v857
        %v879 = vpop.f32.mrf.mxu0
        %v880 = vadd.f32 %v810, %v879
        %v881 = vpop.f32.mrf.mxu0
        %v882 = vadd.f32 %v810, %v881
        %883 = vmatmul.bf16.gmra.mxu0 %v860
        %v884 = vpop.f32.mrf.mxu0
        %v885 = vadd.f32 %v810, %v884
        %v886 = vpop.f32.mrf.mxu0
        %v887 = vadd.f32 %v810, %v886
        %888 = vmatmul.bf16.gmra.mxu0 %v863
        %v889 = vpop.f32.mrf.mxu0
        %v890 = vadd.f32 %v810, %v889
        %v891 = vpop.f32.mrf.mxu0
        %v892 = vadd.f32 %v810, %v891
        %893 = vdwg.mxu0
        %894 = vmatpush.bf16.msra.mxu0 0
        %895 = vmatpush.bf16.msra.mxu0 0
        %896 = vmatpush.bf16.msra.mxu0 0
        %897 = vmatpush.bf16.msra.mxu0 0
        %898 = vmatpush.bf16.msra.mxu0 %v843
        %899 = vmatpush.bf16.msra.mxu0 %v841
        %900 = vmatpush.bf16.msra.mxu0 %v839
        %901 = vmatpush.bf16.msra.mxu0 %v837
        %902 = vmatmul.bf16.gmra.mxu0 %v854
        %v903 = vpop.f32.mrf.mxu0
        %v904 = vadd.f32 %v811, %v903
        %v905 = vpop.f32.mrf.mxu0
        %v906 = vadd.f32 %v811, %v905
        %907 = vmatmul.bf16.gmra.mxu0 %v857
        %v908 = vpop.f32.mrf.mxu0
        %v909 = vadd.f32 %v811, %v908
        %v910 = vpop.f32.mrf.mxu0
        %v911 = vadd.f32 %v811, %v910
        %912 = vmatmul.bf16.gmra.mxu0 %v860
        %v913 = vpop.f32.mrf.mxu0
        %v914 = vadd.f32 %v811, %v913
        %v915 = vpop.f32.mrf.mxu0
        %v916 = vadd.f32 %v811, %v915
        %917 = vmatmul.bf16.gmra.mxu0 %v863
        %v918 = vpop.f32.mrf.mxu0
        %v919 = vadd.f32 %v811, %v918
        %v920 = vpop.f32.mrf.mxu0
        %v921 = vadd.f32 %v811, %v920
        %922 = vdwg.mxu0
        %v923 = vpack.c.bf16 %v904, %v875
        %v924 = vpack.c.bf16 %v906, %v877
        %v925 = vpack.c.bf16 %v909, %v880
        %v926 = vpack.c.bf16 %v911, %v882
        %v927 = vpack.c.bf16 %v914, %v885
        %v928 = vpack.c.bf16 %v916, %v887
        %v929 = vpack.c.bf16 %v919, %v890
        %v930 = vpack.c.bf16 %v921, %v892
        %939 = vrot.lane.b32.xlu0 %v923, 96
        %v940 = vpop.permute.xlu0 %939
        %941 = vrot.lane.b32.xlu0 %v924, 96
        %v942 = vpop.permute.xlu0 %941
        %943 = vrot.lane.b32.xlu0 %v925, 96
        %v944 = vpop.permute.xlu0 %943
        %945 = vrot.lane.b32.xlu0 %v926, 96
        %v946 = vpop.permute.xlu0 %945
        %947 = vrot.lane.b32.xlu0 %v927, 96
        %v948 = vpop.permute.xlu0 %947
        %949 = vrot.lane.b32.xlu0 %v928, 96
        %v950 = vpop.permute.xlu0 %949
        %951 = vrot.lane.b32.xlu0 %v929, 96
        %v952 = vpop.permute.xlu0 %951
        %953 = vrot.lane.b32.xlu0 %v930, 96
        %v954 = vpop.permute.xlu0 %953
        %v955 = vrot.slane %v923, 4
        %v956 = vrot.slane %v924, 4
        %v957 = vrot.slane %v925, 4
        %v958 = vrot.slane %v926, 4
        %v959 = vrot.slane %v927, 4
        %v960 = vrot.slane %v928, 4
        %v961 = vrot.slane %v929, 4
        %v962 = vrot.slane %v930, 4
        %v963 = vrot.slane %v940, 4
        %v964 = vrot.slane %v942, 4
        %v965 = vrot.slane %v944, 4
        %v966 = vrot.slane %v946, 4
        %v967 = vrot.slane %v948, 4
        %v968 = vrot.slane %v950, 4
        %v969 = vrot.slane %v952, 4
        %v970 = vrot.slane %v954, 4
        %v971 = vunpack.c.l.b16 %v923
        %v972 = vunpack.c.l.b16 %v924
        %v973 = vpack.c.b16 %v972, %v971
        %974 = vrot.lane.b32.xlu0 %v973, 64
        %v975 = vpop.permute.xlu0 %974
        %vm976 = vcmask 261120
        %v978 = vsel %vm976, %v973, 0
        %v981 = vsel %vm976, %v975, 0
        %983 = vmatpush.bf16.xpose.msra.mxu0 0
        %984 = vmatpush.bf16.xpose.msra.mxu0 0
        %985 = vmatpush.bf16.xpose.msra.mxu0 0
        %986 = vmatpush.bf16.xpose.msra.mxu0 0
        %987 = vmatpush.bf16.xpose.msra.mxu0 0
        %988 = vmatpush.bf16.xpose.msra.mxu0 0
        %989 = vmatpush.bf16.xpose.msra.mxu0 0
        %990 = vmatpush.bf16.xpose.msra.mxu0 %v981
        %991 = vmatmul.bf16.gmra.mxu0 %v978
        %v992 = vpop.f32.mrf.mxu0
        %v993 = vadd.f32 0.0, %v992
        %v994 = vpop.f32.mrf.mxu0
        %v995 = vadd.f32 0.0, %v994
        %996 = vdwg.mxu0
        %v997 = vunpack.c.l.b16 %v940
        %v998 = vunpack.c.l.b16 %v942
        %v999 = vpack.c.b16 %v998, %v997
        %1000 = vrot.lane.b32.xlu0 %v999, 64
        %v1001 = vpop.permute.xlu0 %1000
        %v1003 = vsel %vm976, %v999, 0
        %v1006 = vsel %vm976, %v1001, 0
        %1008 = vmatpush.bf16.xpose.msra.mxu0 0
        %1009 = vmatpush.bf16.xpose.msra.mxu0 0
        %1010 = vmatpush.bf16.xpose.msra.mxu0 0
        %1011 = vmatpush.bf16.xpose.msra.mxu0 0
        %1012 = vmatpush.bf16.xpose.msra.mxu0 0
        %1013 = vmatpush.bf16.xpose.msra.mxu0 0
        %1014 = vmatpush.bf16.xpose.msra.mxu0 0
        %1015 = vmatpush.bf16.xpose.msra.mxu0 %v1006
        %1016 = vmatmul.bf16.gmra.mxu0 %v1003
        %v1017 = vpop.f32.mrf.mxu0
        %v1018 = vadd.f32 0.0, %v1017
        %v1019 = vpop.f32.mrf.mxu0
        %v1020 = vadd.f32 0.0, %v1019
        %1021 = vdwg.mxu0
        %v1022 = vunpack.c.l.b16 %v925
        %v1023 = vunpack.c.l.b16 %v926
        %v1024 = vpack.c.b16 %v1023, %v1022
        %1025 = vrot.lane.b32.xlu0 %v1024, 64
        %v1026 = vpop.permute.xlu0 %1025
        %v1028 = vsel %vm976, %v1024, 0
        %v1031 = vsel %vm976, %v1026, 0
        %1033 = vmatpush.bf16.xpose.msra.mxu0 0
        %1034 = vmatpush.bf16.xpose.msra.mxu0 0
        %1035 = vmatpush.bf16.xpose.msra.mxu0 0
        %1036 = vmatpush.bf16.xpose.msra.mxu0 0
        %1037 = vmatpush.bf16.xpose.msra.mxu0 0
        %1038 = vmatpush.bf16.xpose.msra.mxu0 0
        %1039 = vmatpush.bf16.xpose.msra.mxu0 0
        %1040 = vmatpush.bf16.xpose.msra.mxu0 %v1031
        %1041 = vmatmul.bf16.gmra.mxu0 %v1028
        %v1042 = vpop.f32.mrf.mxu0
        %v1043 = vadd.f32 0.0, %v1042
        %v1044 = vpop.f32.mrf.mxu0
        %v1045 = vadd.f32 0.0, %v1044
        %1046 = vdwg.mxu0
        %v1047 = vunpack.c.l.b16 %v944
        %v1048 = vunpack.c.l.b16 %v946
        %v1049 = vpack.c.b16 %v1048, %v1047
        %1050 = vrot.lane.b32.xlu0 %v1049, 64
        %v1051 = vpop.permute.xlu0 %1050
        %v1053 = vsel %vm976, %v1049, 0
        %v1056 = vsel %vm976, %v1051, 0
        %1058 = vmatpush.bf16.xpose.msra.mxu0 0
        %1059 = vmatpush.bf16.xpose.msra.mxu0 0
        %1060 = vmatpush.bf16.xpose.msra.mxu0 0
        %1061 = vmatpush.bf16.xpose.msra.mxu0 0
        %1062 = vmatpush.bf16.xpose.msra.mxu0 0
        %1063 = vmatpush.bf16.xpose.msra.mxu0 0
        %1064 = vmatpush.bf16.xpose.msra.mxu0 0
        %1065 = vmatpush.bf16.xpose.msra.mxu0 %v1056
        %1066 = vmatmul.bf16.gmra.mxu0 %v1053
        %v1067 = vpop.f32.mrf.mxu0
        %v1068 = vadd.f32 0.0, %v1067
        %v1069 = vpop.f32.mrf.mxu0
        %v1070 = vadd.f32 0.0, %v1069
        %1071 = vdwg.mxu0
        %v1072 = vunpack.c.l.b16 %v927
        %v1073 = vunpack.c.l.b16 %v928
        %v1074 = vpack.c.b16 %v1073, %v1072
        %1075 = vrot.lane.b32.xlu0 %v1074, 64
        %v1076 = vpop.permute.xlu0 %1075
        %v1078 = vsel %vm976, %v1074, 0
        %v1081 = vsel %vm976, %v1076, 0
        %1083 = vmatpush.bf16.xpose.msra.mxu0 0
        %1084 = vmatpush.bf16.xpose.msra.mxu0 0
        %1085 = vmatpush.bf16.xpose.msra.mxu0 0
        %1086 = vmatpush.bf16.xpose.msra.mxu0 0
        %1087 = vmatpush.bf16.xpose.msra.mxu0 0
        %1088 = vmatpush.bf16.xpose.msra.mxu0 0
        %1089 = vmatpush.bf16.xpose.msra.mxu0 0
        %1090 = vmatpush.bf16.xpose.msra.mxu0 %v1081
        %1091 = vmatmul.bf16.gmra.mxu0 %v1078
        %v1092 = vpop.f32.mrf.mxu0
        %v1093 = vadd.f32 0.0, %v1092
        %v1094 = vpop.f32.mrf.mxu0
        %v1095 = vadd.f32 0.0, %v1094
        %1096 = vdwg.mxu0
        %v1097 = vunpack.c.l.b16 %v948
        %v1098 = vunpack.c.l.b16 %v950
        %v1099 = vpack.c.b16 %v1098, %v1097
        %1100 = vrot.lane.b32.xlu0 %v1099, 64
        %v1101 = vpop.permute.xlu0 %1100
        %v1103 = vsel %vm976, %v1099, 0
        %v1106 = vsel %vm976, %v1101, 0
        %1108 = vmatpush.bf16.xpose.msra.mxu0 0
        %1109 = vmatpush.bf16.xpose.msra.mxu0 0
        %1110 = vmatpush.bf16.xpose.msra.mxu0 0
        %1111 = vmatpush.bf16.xpose.msra.mxu0 0
        %1112 = vmatpush.bf16.xpose.msra.mxu0 0
        %1113 = vmatpush.bf16.xpose.msra.mxu0 0
        %1114 = vmatpush.bf16.xpose.msra.mxu0 0
        %1115 = vmatpush.bf16.xpose.msra.mxu0 %v1106
        %1116 = vmatmul.bf16.gmra.mxu0 %v1103
        %v1117 = vpop.f32.mrf.mxu0
        %v1118 = vadd.f32 0.0, %v1117
        %v1119 = vpop.f32.mrf.mxu0
        %v1120 = vadd.f32 0.0, %v1119
        %1121 = vdwg.mxu0
        %v1122 = vunpack.c.l.b16 %v929
        %v1123 = vunpack.c.l.b16 %v930
        %v1124 = vpack.c.b16 %v1123, %v1122
        %1125 = vrot.lane.b32.xlu0 %v1124, 64
        %v1126 = vpop.permute.xlu0 %1125
        %v1128 = vsel %vm976, %v1124, 0
        %v1131 = vsel %vm976, %v1126, 0
        %1133 = vmatpush.bf16.xpose.msra.mxu0 0
        %1134 = vmatpush.bf16.xpose.msra.mxu0 0
        %1135 = vmatpush.bf16.xpose.msra.mxu0 0
        %1136 = vmatpush.bf16.xpose.msra.mxu0 0
        %1137 = vmatpush.bf16.xpose.msra.mxu0 0
        %1138 = vmatpush.bf16.xpose.msra.mxu0 0
        %1139 = vmatpush.bf16.xpose.msra.mxu0 0
        %1140 = vmatpush.bf16.xpose.msra.mxu0 %v1131
        %1141 = vmatmul.bf16.gmra.mxu0 %v1128
        %v1142 = vpop.f32.mrf.mxu0
        %v1143 = vadd.f32 0.0, %v1142
        %v1144 = vpop.f32.mrf.mxu0
        %v1145 = vadd.f32 0.0, %v1144
        %1146 = vdwg.mxu0
        %v1147 = vunpack.c.l.b16 %v952
        %v1148 = vunpack.c.l.b16 %v954
        %v1149 = vpack.c.b16 %v1148, %v1147
        %1150 = vrot.lane.b32.xlu0 %v1149, 64
        %v1151 = vpop.permute.xlu0 %1150
        %v1153 = vsel %vm976, %v1149, 0
        %v1156 = vsel %vm976, %v1151, 0
        %1158 = vmatpush.bf16.xpose.msra.mxu0 0
        %1159 = vmatpush.bf16.xpose.msra.mxu0 0
        %1160 = vmatpush.bf16.xpose.msra.mxu0 0
        %1161 = vmatpush.bf16.xpose.msra.mxu0 0
        %1162 = vmatpush.bf16.xpose.msra.mxu0 0
        %1163 = vmatpush.bf16.xpose.msra.mxu0 0
        %1164 = vmatpush.bf16.xpose.msra.mxu0 0
        %1165 = vmatpush.bf16.xpose.msra.mxu0 %v1156
        %1166 = vmatmul.bf16.gmra.mxu0 %v1153
        %v1167 = vpop.f32.mrf.mxu0
        %v1168 = vadd.f32 0.0, %v1167
        %v1169 = vpop.f32.mrf.mxu0
        %v1170 = vadd.f32 0.0, %v1169
        %1171 = vdwg.mxu0
        %v1172 = vmul.f32 %v993, 0.17677669
        %v1173 = vmul.f32 %v995, 0.17677669
        %v1174 = vmul.f32 %v1018, 0.17677669
        %v1175 = vmul.f32 %v1020, 0.17677669
        %v1176 = vmul.f32 %v1043, 0.17677669
        %v1177 = vmul.f32 %v1045, 0.17677669
        %v1178 = vmul.f32 %v1068, 0.17677669
        %v1179 = vmul.f32 %v1070, 0.17677669
        %v1180 = vmul.f32 %v1093, 0.17677669
        %v1181 = vmul.f32 %v1095, 0.17677669
        %v1182 = vmul.f32 %v1118, 0.17677669
        %v1183 = vmul.f32 %v1120, 0.17677669
        %v1184 = vmul.f32 %v1143, 0.17677669
        %v1185 = vmul.f32 %v1145, 0.17677669
        %v1186 = vmul.f32 %v1168, 0.17677669
        %v1187 = vmul.f32 %v1170, 0.17677669
        %v1188 = vld [vmem:[%s438] sm:$0x1]
        %v1189 = vld [vmem:[%s438 + $0x1] sm:$0x1]
        %v1190 = vld [vmem:[%s438 + $0x2] sm:$0x1]
        %v1191 = vld [vmem:[%s438 + $0x3] sm:$0x1]
        %v1196 = vperm.slane %v1188, 0
        %v1197 = vperm.slane %v1189, 0
        %v1198 = vperm.slane %v1190, 0
        %v1199 = vperm.slane %v1191, 0
        %v1204 = vadd.f32 %v1172, %v1196
        %v1205 = vadd.f32 %v1173, %v1196
        %v1206 = vadd.f32 %v1174, %v1196
        %v1207 = vadd.f32 %v1175, %v1196
        %v1208 = vadd.f32 %v1176, %v1197
        %v1209 = vadd.f32 %v1177, %v1197
        %v1210 = vadd.f32 %v1178, %v1197
        %v1211 = vadd.f32 %v1179, %v1197
        %v1212 = vadd.f32 %v1180, %v1198
        %v1213 = vadd.f32 %v1181, %v1198
        %v1214 = vadd.f32 %v1182, %v1198
        %v1215 = vadd.f32 %v1183, %v1198
        %v1216 = vadd.f32 %v1184, %v1199
        %v1217 = vadd.f32 %v1185, %v1199
        %v1218 = vadd.f32 %v1186, %v1199
        %v1219 = vadd.f32 %v1187, %v1199
        %vm1220 = vcmask 130048
        %v1221 = vsel %vm1220, %v1204, -inf
        %1222 = vmax.xlane.f32.xlu0 %v1221
        %v1223 = vpop.xlane.xlu0 %1222
        %v1224 = vsel %vm1220, %v1205, -inf
        %1225 = vmax.xlane.f32.xlu0 %v1224
        %v1226 = vpop.xlane.xlu0 %1225
        %v1227 = vsel %vm1220, %v1206, -inf
        %1228 = vmax.xlane.f32.xlu0 %v1227
        %v1229 = vpop.xlane.xlu0 %1228
        %v1230 = vsel %vm1220, %v1207, -inf
        %1231 = vmax.xlane.f32.xlu0 %v1230
        %v1232 = vpop.xlane.xlu0 %1231
        %v1233 = vsel %vm1220, %v1208, -inf
        %1234 = vmax.xlane.f32.xlu0 %v1233
        %v1235 = vpop.xlane.xlu0 %1234
        %v1236 = vsel %vm1220, %v1209, -inf
        %1237 = vmax.xlane.f32.xlu0 %v1236
        %v1238 = vpop.xlane.xlu0 %1237
        %v1239 = vsel %vm1220, %v1210, -inf
        %1240 = vmax.xlane.f32.xlu0 %v1239
        %v1241 = vpop.xlane.xlu0 %1240
        %v1242 = vsel %vm1220, %v1211, -inf
        %1243 = vmax.xlane.f32.xlu0 %v1242
        %v1244 = vpop.xlane.xlu0 %1243
        %v1245 = vsel %vm1220, %v1212, -inf
        %1246 = vmax.xlane.f32.xlu0 %v1245
        %v1247 = vpop.xlane.xlu0 %1246
        %v1248 = vsel %vm1220, %v1213, -inf
        %1249 = vmax.xlane.f32.xlu0 %v1248
        %v1250 = vpop.xlane.xlu0 %1249
        %v1251 = vsel %vm1220, %v1214, -inf
        %1252 = vmax.xlane.f32.xlu0 %v1251
        %v1253 = vpop.xlane.xlu0 %1252
        %v1254 = vsel %vm1220, %v1215, -inf
        %1255 = vmax.xlane.f32.xlu0 %v1254
        %v1256 = vpop.xlane.xlu0 %1255
        %v1257 = vsel %vm1220, %v1216, -inf
        %1258 = vmax.xlane.f32.xlu0 %v1257
        %v1259 = vpop.xlane.xlu0 %1258
        %v1260 = vsel %vm1220, %v1217, -inf
        %1261 = vmax.xlane.f32.xlu0 %v1260
        %v1262 = vpop.xlane.xlu0 %1261
        %v1263 = vsel %vm1220, %v1218, -inf
        %1264 = vmax.xlane.f32.xlu0 %v1263
        %v1265 = vpop.xlane.xlu0 %1264
        %v1266 = vsel %vm1220, %v1219, -inf
        %1267 = vmax.xlane.f32.xlu0 %v1266
        %v1268 = vpop.xlane.xlu0 %1267
        %v1269 = vsub.f32 %v1204, %v1223
        %v1270 = vsub.f32 %v1205, %v1226
        %v1271 = vsub.f32 %v1206, %v1229
        %v1272 = vsub.f32 %v1207, %v1232
        %v1273 = vsub.f32 %v1208, %v1235
        %v1274 = vsub.f32 %v1209, %v1238
        %v1275 = vsub.f32 %v1210, %v1241
        %v1276 = vsub.f32 %v1211, %v1244
        %v1277 = vsub.f32 %v1212, %v1247
        %v1278 = vsub.f32 %v1213, %v1250
        %v1279 = vsub.f32 %v1214, %v1253
        %v1280 = vsub.f32 %v1215, %v1256
        %v1281 = vsub.f32 %v1216, %v1259
        %v1282 = vsub.f32 %v1217, %v1262
        %v1283 = vsub.f32 %v1218, %v1265
        %v1284 = vsub.f32 %v1219, %v1268
        %v1285 = vmul.f32 %v1269, 1.442695
        %v1286 = vpow.pop %v1285
        %v1287 = vmul.f32 %v1270, 1.442695
        %v1288 = vpow.pop %v1287
        %v1289 = vmul.f32 %v1271, 1.442695
        %v1290 = vpow.pop %v1289
        %v1291 = vmul.f32 %v1272, 1.442695
        %v1292 = vpow.pop %v1291
        %v1293 = vmul.f32 %v1273, 1.442695
        %v1294 = vpow.pop %v1293
        %v1295 = vmul.f32 %v1274, 1.442695
        %v1296 = vpow.pop %v1295
        %v1297 = vmul.f32 %v1275, 1.442695
        %v1298 = vpow.pop %v1297
        %v1299 = vmul.f32 %v1276, 1.442695
        %v1300 = vpow.pop %v1299
        %v1301 = vmul.f32 %v1277, 1.442695
        %v1302 = vpow.pop %v1301
        %v1303 = vmul.f32 %v1278, 1.442695
        %v1304 = vpow.pop %v1303
        %v1305 = vmul.f32 %v1279, 1.442695
        %v1306 = vpow.pop %v1305
        %v1307 = vmul.f32 %v1280, 1.442695
        %v1308 = vpow.pop %v1307
        %v1309 = vmul.f32 %v1281, 1.442695
        %v1310 = vpow.pop %v1309
        %v1311 = vmul.f32 %v1282, 1.442695
        %v1312 = vpow.pop %v1311
        %v1313 = vmul.f32 %v1283, 1.442695
        %v1314 = vpow.pop %v1313
        %v1315 = vmul.f32 %v1284, 1.442695
        %v1316 = vpow.pop %v1315
        %v1317 = vsel %vm1220, %v1286, 0.0
        %1318 = vadd.xlane.f32.xlu0 %v1317
        %v1319 = vpop.xlane.xlu0 %1318
        %v1320 = vsel %vm1220, %v1288, 0.0
        %1321 = vadd.xlane.f32.xlu0 %v1320
        %v1322 = vpop.xlane.xlu0 %1321
        %v1323 = vsel %vm1220, %v1290, 0.0
        %1324 = vadd.xlane.f32.xlu0 %v1323
        %v1325 = vpop.xlane.xlu0 %1324
        %v1326 = vsel %vm1220, %v1292, 0.0
        %1327 = vadd.xlane.f32.xlu0 %v1326
        %v1328 = vpop.xlane.xlu0 %1327
        %v1329 = vsel %vm1220, %v1294, 0.0
        %1330 = vadd.xlane.f32.xlu0 %v1329
        %v1331 = vpop.xlane.xlu0 %1330
        %v1332 = vsel %vm1220, %v1296, 0.0
        %1333 = vadd.xlane.f32.xlu0 %v1332
        %v1334 = vpop.xlane.xlu0 %1333
        %v1335 = vsel %vm1220, %v1298, 0.0
        %1336 = vadd.xlane.f32.xlu0 %v1335
        %v1337 = vpop.xlane.xlu0 %1336
        %v1338 = vsel %vm1220, %v1300, 0.0
        %1339 = vadd.xlane.f32.xlu0 %v1338
        %v1340 = vpop.xlane.xlu0 %1339
        %v1341 = vsel %vm1220, %v1302, 0.0
        %1342 = vadd.xlane.f32.xlu0 %v1341
        %v1343 = vpop.xlane.xlu0 %1342
        %v1344 = vsel %vm1220, %v1304, 0.0
        %1345 = vadd.xlane.f32.xlu0 %v1344
        %v1346 = vpop.xlane.xlu0 %1345
        %v1347 = vsel %vm1220, %v1306, 0.0
        %1348 = vadd.xlane.f32.xlu0 %v1347
        %v1349 = vpop.xlane.xlu0 %1348
        %v1350 = vsel %vm1220, %v1308, 0.0
        %1351 = vadd.xlane.f32.xlu0 %v1350
        %v1352 = vpop.xlane.xlu0 %1351
        %v1353 = vsel %vm1220, %v1310, 0.0
        %1354 = vadd.xlane.f32.xlu0 %v1353
        %v1355 = vpop.xlane.xlu0 %1354
        %v1356 = vsel %vm1220, %v1312, 0.0
        %1357 = vadd.xlane.f32.xlu0 %v1356
        %v1358 = vpop.xlane.xlu0 %1357
        %v1359 = vsel %vm1220, %v1314, 0.0
        %1360 = vadd.xlane.f32.xlu0 %v1359
        %v1361 = vpop.xlane.xlu0 %1360
        %v1362 = vsel %vm1220, %v1316, 0.0
        %1363 = vadd.xlane.f32.xlu0 %v1362
        %v1364 = vpop.xlane.xlu0 %1363
        %v1365 = vrcp.pop %v1319
        %v1366 = vrcp.pop %v1322
        %v1367 = vrcp.pop %v1325
        %v1368 = vrcp.pop %v1328
        %v1369 = vrcp.pop %v1331
        %v1370 = vrcp.pop %v1334
        %v1371 = vrcp.pop %v1337
        %v1372 = vrcp.pop %v1340
        %v1373 = vrcp.pop %v1343
        %v1374 = vrcp.pop %v1346
        %v1375 = vrcp.pop %v1349
        %v1376 = vrcp.pop %v1352
        %v1377 = vrcp.pop %v1355
        %v1378 = vrcp.pop %v1358
        %v1379 = vrcp.pop %v1361
        %v1380 = vrcp.pop %v1364
        %v1381 = vmul.f32 %v1286, %v1365
        %v1382 = vmul.f32 %v1288, %v1366
        %v1383 = vmul.f32 %v1290, %v1367
        %v1384 = vmul.f32 %v1292, %v1368
        %v1385 = vmul.f32 %v1294, %v1369
        %v1386 = vmul.f32 %v1296, %v1370
        %v1387 = vmul.f32 %v1298, %v1371
        %v1388 = vmul.f32 %v1300, %v1372
        %v1389 = vmul.f32 %v1302, %v1373
        %v1390 = vmul.f32 %v1304, %v1374
        %v1391 = vmul.f32 %v1306, %v1375
        %v1392 = vmul.f32 %v1308, %v1376
        %v1393 = vmul.f32 %v1310, %v1377
        %v1394 = vmul.f32 %v1312, %v1378
        %v1395 = vmul.f32 %v1314, %v1379
        %v1396 = vmul.f32 %v1316, %v1380
        %v1397 = vpack.c.bf16 %v1381, %v1381
        %v1398 = vpack.c.bf16 %v1382, %v1382
        %v1399 = vpack.c.bf16 %v1383, %v1383
        %v1400 = vpack.c.bf16 %v1384, %v1384
        %v1401 = vpack.c.bf16 %v1385, %v1385
        %v1402 = vpack.c.bf16 %v1386, %v1386
        %v1403 = vpack.c.bf16 %v1387, %v1387
        %v1404 = vpack.c.bf16 %v1388, %v1388
        %v1405 = vpack.c.bf16 %v1389, %v1389
        %v1406 = vpack.c.bf16 %v1390, %v1390
        %v1407 = vpack.c.bf16 %v1391, %v1391
        %v1408 = vpack.c.bf16 %v1392, %v1392
        %v1409 = vpack.c.bf16 %v1393, %v1393
        %v1410 = vpack.c.bf16 %v1394, %v1394
        %v1411 = vpack.c.bf16 %v1395, %v1395
        %v1412 = vpack.c.bf16 %v1396, %v1396
        %v1415 = vunpack.c.l.b16 %v1397
        %v1416 = vunpack.c.l.b16 %v1398
        %v1417 = vpack.c.b16 %v1416, %v1415
        %v1418 = vunpack.c.l.b16 %v955
        %v1419 = vunpack.c.l.b16 %v956
        %v1420 = vpack.c.b16 %v1419, %v1418
        %v1423 = vsel %vm1220, %v1417, 0
        %1425 = vmatpush.bf16.msra.mxu0 0
        %1426 = vmatpush.bf16.msra.mxu0 0
        %1427 = vmatpush.bf16.msra.mxu0 0
        %1428 = vmatpush.bf16.msra.mxu0 0
        %1429 = vmatpush.bf16.msra.mxu0 0
        %1430 = vmatpush.bf16.msra.mxu0 0
        %1431 = vmatpush.bf16.msra.mxu0 0
        %1432 = vmatpush.bf16.msra.mxu0 %v1420
        %1433 = vmatmul.bf16.gmra.mxu0 %v1423
        %v1434 = vpop.f32.mrf.mxu0
        %v1435 = vadd.f32 0.0, %v1434
        %v1436 = vpop.f32.mrf.mxu0
        %v1437 = vadd.f32 0.0, %v1436
        %1438 = vdwg.mxu0
        %v1441 = vunpack.c.l.b16 %v1399
        %v1442 = vunpack.c.l.b16 %v1400
        %v1443 = vpack.c.b16 %v1442, %v1441
        %v1444 = vunpack.c.l.b16 %v963
        %v1445 = vunpack.c.l.b16 %v964
        %v1446 = vpack.c.b16 %v1445, %v1444
        %v1449 = vsel %vm1220, %v1443, 0
        %1451 = vmatpush.bf16.msra.mxu0 0
        %1452 = vmatpush.bf16.msra.mxu0 0
        %1453 = vmatpush.bf16.msra.mxu0 0
        %1454 = vmatpush.bf16.msra.mxu0 0
        %1455 = vmatpush.bf16.msra.mxu0 0
        %1456 = vmatpush.bf16.msra.mxu0 0
        %1457 = vmatpush.bf16.msra.mxu0 0
        %1458 = vmatpush.bf16.msra.mxu0 %v1446
        %1459 = vmatmul.bf16.gmra.mxu0 %v1449
        %v1460 = vpop.f32.mrf.mxu0
        %v1461 = vadd.f32 0.0, %v1460
        %v1462 = vpop.f32.mrf.mxu0
        %v1463 = vadd.f32 0.0, %v1462
        %1464 = vdwg.mxu0
        %v1467 = vunpack.c.l.b16 %v1401
        %v1468 = vunpack.c.l.b16 %v1402
        %v1469 = vpack.c.b16 %v1468, %v1467
        %v1470 = vunpack.c.l.b16 %v957
        %v1471 = vunpack.c.l.b16 %v958
        %v1472 = vpack.c.b16 %v1471, %v1470
        %v1475 = vsel %vm1220, %v1469, 0
        %1477 = vmatpush.bf16.msra.mxu0 0
        %1478 = vmatpush.bf16.msra.mxu0 0
        %1479 = vmatpush.bf16.msra.mxu0 0
        %1480 = vmatpush.bf16.msra.mxu0 0
        %1481 = vmatpush.bf16.msra.mxu0 0
        %1482 = vmatpush.bf16.msra.mxu0 0
        %1483 = vmatpush.bf16.msra.mxu0 0
        %1484 = vmatpush.bf16.msra.mxu0 %v1472
        %1485 = vmatmul.bf16.gmra.mxu0 %v1475
        %v1486 = vpop.f32.mrf.mxu0
        %v1487 = vadd.f32 0.0, %v1486
        %v1488 = vpop.f32.mrf.mxu0
        %v1489 = vadd.f32 0.0, %v1488
        %1490 = vdwg.mxu0
        %v1493 = vunpack.c.l.b16 %v1403
        %v1494 = vunpack.c.l.b16 %v1404
        %v1495 = vpack.c.b16 %v1494, %v1493
        %v1496 = vunpack.c.l.b16 %v965
        %v1497 = vunpack.c.l.b16 %v966
        %v1498 = vpack.c.b16 %v1497, %v1496
        %v1501 = vsel %vm1220, %v1495, 0
        %1503 = vmatpush.bf16.msra.mxu0 0
        %1504 = vmatpush.bf16.msra.mxu0 0
        %1505 = vmatpush.bf16.msra.mxu0 0
        %1506 = vmatpush.bf16.msra.mxu0 0
        %1507 = vmatpush.bf16.msra.mxu0 0
        %1508 = vmatpush.bf16.msra.mxu0 0
        %1509 = vmatpush.bf16.msra.mxu0 0
        %1510 = vmatpush.bf16.msra.mxu0 %v1498
        %1511 = vmatmul.bf16.gmra.mxu0 %v1501
        %v1512 = vpop.f32.mrf.mxu0
        %v1513 = vadd.f32 0.0, %v1512
        %v1514 = vpop.f32.mrf.mxu0
        %v1515 = vadd.f32 0.0, %v1514
        %1516 = vdwg.mxu0
        %v1519 = vunpack.c.l.b16 %v1405
        %v1520 = vunpack.c.l.b16 %v1406
        %v1521 = vpack.c.b16 %v1520, %v1519
        %v1522 = vunpack.c.l.b16 %v959
        %v1523 = vunpack.c.l.b16 %v960
        %v1524 = vpack.c.b16 %v1523, %v1522
        %v1527 = vsel %vm1220, %v1521, 0
        %1529 = vmatpush.bf16.msra.mxu0 0
        %1530 = vmatpush.bf16.msra.mxu0 0
        %1531 = vmatpush.bf16.msra.mxu0 0
        %1532 = vmatpush.bf16.msra.mxu0 0
        %1533 = vmatpush.bf16.msra.mxu0 0
        %1534 = vmatpush.bf16.msra.mxu0 0
        %1535 = vmatpush.bf16.msra.mxu0 0
        %1536 = vmatpush.bf16.msra.mxu0 %v1524
        %1537 = vmatmul.bf16.gmra.mxu0 %v1527
        %v1538 = vpop.f32.mrf.mxu0
        %v1539 = vadd.f32 0.0, %v1538
        %v1540 = vpop.f32.mrf.mxu0
        %v1541 = vadd.f32 0.0, %v1540
        %1542 = vdwg.mxu0
        %v1545 = vunpack.c.l.b16 %v1407
        %v1546 = vunpack.c.l.b16 %v1408
        %v1547 = vpack.c.b16 %v1546, %v1545
        %v1548 = vunpack.c.l.b16 %v967
        %v1549 = vunpack.c.l.b16 %v968
        %v1550 = vpack.c.b16 %v1549, %v1548
        %v1553 = vsel %vm1220, %v1547, 0
        %1555 = vmatpush.bf16.msra.mxu0 0
        %1556 = vmatpush.bf16.msra.mxu0 0
        %1557 = vmatpush.bf16.msra.mxu0 0
        %1558 = vmatpush.bf16.msra.mxu0 0
        %1559 = vmatpush.bf16.msra.mxu0 0
        %1560 = vmatpush.bf16.msra.mxu0 0
        %1561 = vmatpush.bf16.msra.mxu0 0
        %1562 = vmatpush.bf16.msra.mxu0 %v1550
        %1563 = vmatmul.bf16.gmra.mxu0 %v1553
        %v1564 = vpop.f32.mrf.mxu0
        %v1565 = vadd.f32 0.0, %v1564
        %v1566 = vpop.f32.mrf.mxu0
        %v1567 = vadd.f32 0.0, %v1566
        %1568 = vdwg.mxu0
        %v1571 = vunpack.c.l.b16 %v1409
        %v1572 = vunpack.c.l.b16 %v1410
        %v1573 = vpack.c.b16 %v1572, %v1571
        %v1574 = vunpack.c.l.b16 %v961
        %v1575 = vunpack.c.l.b16 %v962
        %v1576 = vpack.c.b16 %v1575, %v1574
        %v1579 = vsel %vm1220, %v1573, 0
        %1581 = vmatpush.bf16.msra.mxu0 0
        %1582 = vmatpush.bf16.msra.mxu0 0
        %1583 = vmatpush.bf16.msra.mxu0 0
        %1584 = vmatpush.bf16.msra.mxu0 0
        %1585 = vmatpush.bf16.msra.mxu0 0
        %1586 = vmatpush.bf16.msra.mxu0 0
        %1587 = vmatpush.bf16.msra.mxu0 0
        %1588 = vmatpush.bf16.msra.mxu0 %v1576
        %1589 = vmatmul.bf16.gmra.mxu0 %v1579
        %v1590 = vpop.f32.mrf.mxu0
        %v1591 = vadd.f32 0.0, %v1590
        %v1592 = vpop.f32.mrf.mxu0
        %v1593 = vadd.f32 0.0, %v1592
        %1594 = vdwg.mxu0
        %v1597 = vunpack.c.l.b16 %v1411
        %v1598 = vunpack.c.l.b16 %v1412
        %v1599 = vpack.c.b16 %v1598, %v1597
        %v1600 = vunpack.c.l.b16 %v969
        %v1601 = vunpack.c.l.b16 %v970
        %v1602 = vpack.c.b16 %v1601, %v1600
        %v1605 = vsel %vm1220, %v1599, 0
        %1607 = vmatpush.bf16.msra.mxu0 0
        %1608 = vmatpush.bf16.msra.mxu0 0
        %1609 = vmatpush.bf16.msra.mxu0 0
        %1610 = vmatpush.bf16.msra.mxu0 0
        %1611 = vmatpush.bf16.msra.mxu0 0
        %1612 = vmatpush.bf16.msra.mxu0 0
        %1613 = vmatpush.bf16.msra.mxu0 0
        %1614 = vmatpush.bf16.msra.mxu0 %v1602
        %1615 = vmatmul.bf16.gmra.mxu0 %v1605
        %v1616 = vpop.f32.mrf.mxu0
        %v1617 = vadd.f32 0.0, %v1616
        %v1618 = vpop.f32.mrf.mxu0
        %v1619 = vadd.f32 0.0, %v1618
        %1620 = vdwg.mxu0
        %1629 = vrot.lane.b32.xlu0 %v1461, 32
        %v1630 = vpop.permute.xlu0 %1629
        %1631 = vrot.lane.b32.xlu0 %v1463, 32
        %v1632 = vpop.permute.xlu0 %1631
        %1633 = vrot.lane.b32.xlu0 %v1513, 32
        %v1634 = vpop.permute.xlu0 %1633
        %1635 = vrot.lane.b32.xlu0 %v1515, 32
        %v1636 = vpop.permute.xlu0 %1635
        %1637 = vrot.lane.b32.xlu0 %v1565, 32
        %v1638 = vpop.permute.xlu0 %1637
        %1639 = vrot.lane.b32.xlu0 %v1567, 32
        %v1640 = vpop.permute.xlu0 %1639
        %1641 = vrot.lane.b32.xlu0 %v1617, 32
        %v1642 = vpop.permute.xlu0 %1641
        %1643 = vrot.lane.b32.xlu0 %v1619, 32
        %v1644 = vpop.permute.xlu0 %1643
        %v1653 = vsel %vm976, %v1435, %v1630
        %v1654 = vsel %vm976, %v1437, %v1632
        %v1655 = vsel %vm976, %v1487, %v1634
        %v1656 = vsel %vm976, %v1489, %v1636
        %v1657 = vsel %vm976, %v1539, %v1638
        %v1658 = vsel %vm976, %v1541, %v1640
        %v1659 = vsel %vm976, %v1591, %v1642
        %v1660 = vsel %vm976, %v1593, %v1644
        %v1661 = vpack.c.bf16 %v1654, %v1653
        %v1662 = vpack.c.bf16 %v1656, %v1655
        %v1663 = vpack.c.bf16 %v1658, %v1657
        %v1664 = vpack.c.bf16 %v1660, %v1659
        %v1665 = vld [vmem:[%s458] sm:$0xf]
        %v1666 = vld [vmem:[%s458 + $0x4] sm:$0xf]
        %v1667 = vld [vmem:[%s458 + $0x8] sm:$0xf]
        %v1668 = vld [vmem:[%s458 + $0xc] sm:$0xf]
        %v1669 = vld [vmem:[%s458 + $0x10] sm:$0xf]
        %v1670 = vld [vmem:[%s458 + $0x14] sm:$0xf]
        %v1671 = vld [vmem:[%s458 + $0x18] sm:$0xf]
        %v1672 = vld [vmem:[%s458 + $0x1c] sm:$0xf]
        %v1673 = vperm.slane %v788, 1
        %v1682 = vunpack.c.l.b16 %v1665
        %v1683 = vunpack.c.l.b16 %v1666
        %v1684 = vunpack.c.l.b16 %v1667
        %v1685 = vunpack.c.l.b16 %v1668
        %v1686 = vunpack.c.l.b16 %v1669
        %v1687 = vunpack.c.l.b16 %v1670
        %v1688 = vunpack.c.l.b16 %v1671
        %v1689 = vunpack.c.l.b16 %v1672
        %v1690 = vpack.c.b16 %v1683, %v1682
        %v1691 = vpack.c.b16 %v1685, %v1684
        %v1692 = vpack.c.b16 %v1687, %v1686
        %v1693 = vpack.c.b16 %v1689, %v1688
        %v1699 = vsel %vm852, %v1661, 0
        %v1702 = vsel %vm852, %v1662, 0
        %v1705 = vsel %vm852, %v1663, 0
        %v1708 = vsel %vm852, %v1664, 0
        %1710 = vmatpush.bf16.msra.mxu0 0
        %1711 = vmatpush.bf16.msra.mxu0 0
        %1712 = vmatpush.bf16.msra.mxu0 0
        %1713 = vmatpush.bf16.msra.mxu0 0
        %1714 = vmatpush.bf16.msra.mxu0 %v1693
        %1715 = vmatpush.bf16.msra.mxu0 %v1692
        %1716 = vmatpush.bf16.msra.mxu0 %v1691
        %1717 = vmatpush.bf16.msra.mxu0 %v1690
        %1718 = vmatmul.bf16.gmra.mxu0 %v1699
        %v1719 = vpop.f32.mrf.mxu0
        %v1720 = vadd.f32 %v1673, %v1719
        %v1721 = vpop.f32.mrf.mxu0
        %v1722 = vadd.f32 %v1673, %v1721
        %1723 = vmatmul.bf16.gmra.mxu0 %v1702
        %v1724 = vpop.f32.mrf.mxu0
        %v1725 = vadd.f32 %v1673, %v1724
        %v1726 = vpop.f32.mrf.mxu0
        %v1727 = vadd.f32 %v1673, %v1726
        %1728 = vmatmul.bf16.gmra.mxu0 %v1705
        %v1729 = vpop.f32.mrf.mxu0
        %v1730 = vadd.f32 %v1673, %v1729
        %v1731 = vpop.f32.mrf.mxu0
        %v1732 = vadd.f32 %v1673, %v1731
        %1733 = vmatmul.bf16.gmra.mxu0 %v1708
        %v1734 = vpop.f32.mrf.mxu0
        %v1735 = vadd.f32 %v1673, %v1734
        %v1736 = vpop.f32.mrf.mxu0
        %v1737 = vadd.f32 %v1673, %v1736
        %1738 = vdwg.mxu0
        %v1739 = vadd.f32 %v1720, %v790
        %v1740 = vadd.f32 %v1722, %v791
        %v1741 = vadd.f32 %v1725, %v792
        %v1742 = vadd.f32 %v1727, %v793
        %v1743 = vadd.f32 %v1730, %v794
        %v1744 = vadd.f32 %v1732, %v795
        %v1745 = vadd.f32 %v1735, %v796
        %v1746 = vadd.f32 %v1737, %v797
        %v1747 = vsel %vm852, %v1739, 0.0
        %1748 = vadd.xlane.f32.xlu0 %v1747
        %v1749 = vpop.xlane.xlu0 %1748
        %v1750 = vsel %vm852, %v1740, 0.0
        %1751 = vadd.xlane.f32.xlu0 %v1750
        %v1752 = vpop.xlane.xlu0 %1751
        %v1753 = vsel %vm852, %v1741, 0.0
        %1754 = vadd.xlane.f32.xlu0 %v1753
        %v1755 = vpop.xlane.xlu0 %1754
        %v1756 = vsel %vm852, %v1742, 0.0
        %1757 = vadd.xlane.f32.xlu0 %v1756
        %v1758 = vpop.xlane.xlu0 %1757
        %v1759 = vsel %vm852, %v1743, 0.0
        %1760 = vadd.xlane.f32.xlu0 %v1759
        %v1761 = vpop.xlane.xlu0 %1760
        %v1762 = vsel %vm852, %v1744, 0.0
        %1763 = vadd.xlane.f32.xlu0 %v1762
        %v1764 = vpop.xlane.xlu0 %1763
        %v1765 = vsel %vm852, %v1745, 0.0
        %1766 = vadd.xlane.f32.xlu0 %v1765
        %v1767 = vpop.xlane.xlu0 %1766
        %v1768 = vsel %vm852, %v1746, 0.0
        %1769 = vadd.xlane.f32.xlu0 %v1768
        %v1770 = vpop.xlane.xlu0 %1769
        %v1771 = vrcp.pop 64.0
        %v1772 = vmul.f32 64.0, %v1771
        %v1773 = vsub.f32 1.0, %v1772
        %v1774 = vmul.f32 %v1771, %v1773
        %v1775 = vadd.f32 %v1771, %v1774
        %vm1776 = vweird.f32 %v1771
        %v1777 = vsel %vm1776, %v1771, %v1775
        %v1778 = vmul.f32 %v1749, %v1777
        %v1779 = vmul.f32 %v1752, %v1777
        %v1780 = vmul.f32 %v1755, %v1777
        %v1781 = vmul.f32 %v1758, %v1777
        %v1782 = vmul.f32 %v1761, %v1777
        %v1783 = vmul.f32 %v1764, %v1777
        %v1784 = vmul.f32 %v1767, %v1777
        %v1785 = vmul.f32 %v1770, %v1777
        %v1786 = vsub.f32 %v1739, %v1778
        %v1787 = vsub.f32 %v1740, %v1779
        %v1788 = vsub.f32 %v1741, %v1780
        %v1789 = vsub.f32 %v1742, %v1781
        %v1790 = vsub.f32 %v1743, %v1782
        %v1791 = vsub.f32 %v1744, %v1783
        %v1792 = vsub.f32 %v1745, %v1784
        %v1793 = vsub.f32 %v1746, %v1785
        %v1794 = vmul.f32 %v1786, %v1786
        %v1795 = vmul.f32 %v1787, %v1787
        %v1796 = vmul.f32 %v1788, %v1788
        %v1797 = vmul.f32 %v1789, %v1789
        %v1798 = vmul.f32 %v1790, %v1790
        %v1799 = vmul.f32 %v1791, %v1791
        %v1800 = vmul.f32 %v1792, %v1792
        %v1801 = vmul.f32 %v1793, %v1793
        %v1802 = vsel %vm852, %v1794, 0.0
        %1803 = vadd.xlane.f32.xlu0 %v1802
        %v1804 = vpop.xlane.xlu0 %1803
        %v1805 = vsel %vm852, %v1795, 0.0
        %1806 = vadd.xlane.f32.xlu0 %v1805
        %v1807 = vpop.xlane.xlu0 %1806
        %v1808 = vsel %vm852, %v1796, 0.0
        %1809 = vadd.xlane.f32.xlu0 %v1808
        %v1810 = vpop.xlane.xlu0 %1809
        %v1811 = vsel %vm852, %v1797, 0.0
        %1812 = vadd.xlane.f32.xlu0 %v1811
        %v1813 = vpop.xlane.xlu0 %1812
        %v1814 = vsel %vm852, %v1798, 0.0
        %1815 = vadd.xlane.f32.xlu0 %v1814
        %v1816 = vpop.xlane.xlu0 %1815
        %v1817 = vsel %vm852, %v1799, 0.0
        %1818 = vadd.xlane.f32.xlu0 %v1817
        %v1819 = vpop.xlane.xlu0 %1818
        %v1820 = vsel %vm852, %v1800, 0.0
        %1821 = vadd.xlane.f32.xlu0 %v1820
        %v1822 = vpop.xlane.xlu0 %1821
        %v1823 = vsel %vm852, %v1801, 0.0
        %1824 = vadd.xlane.f32.xlu0 %v1823
        %v1825 = vpop.xlane.xlu0 %1824
        %v1826 = vmul.f32 %v1804, %v1777
        %v1827 = vmul.f32 %v1807, %v1777
        %v1828 = vmul.f32 %v1810, %v1777
        %v1829 = vmul.f32 %v1813, %v1777
        %v1830 = vmul.f32 %v1816, %v1777
        %v1831 = vmul.f32 %v1819, %v1777
        %v1832 = vmul.f32 %v1822, %v1777
        %v1833 = vmul.f32 %v1825, %v1777
        %v1834 = vadd.f32 %v1826, 1e-12
        %v1835 = vadd.f32 %v1827, 1e-12
        %v1836 = vadd.f32 %v1828, 1e-12
        %v1837 = vadd.f32 %v1829, 1e-12
        %v1838 = vadd.f32 %v1830, 1e-12
        %v1839 = vadd.f32 %v1831, 1e-12
        %v1840 = vadd.f32 %v1832, 1e-12
        %v1841 = vadd.f32 %v1833, 1e-12
        %v1842 = vrsqrt.pop %v1834
        %v1843 = vmul.f32 %v1842, %v1834
        %v1844 = vmul.f32 %v1843, %v1842
        %v1845 = vmul.f32 0.5, %v1844
        %v1846 = vsub.f32 1.5, %v1845
        %v1847 = vmul.f32 %v1842, %v1846
        %vm1848 = vweird.f32 %v1834
        %vm1849 = vweird.f32 %v1842
        %vm1850 = vmor %vm1848, %vm1849
        %v1851 = vsel %vm1850, %v1842, %v1847
        %v1852 = vrsqrt.pop %v1835
        %v1853 = vmul.f32 %v1852, %v1835
        %v1854 = vmul.f32 %v1853, %v1852
        %v1855 = vmul.f32 0.5, %v1854
        %v1856 = vsub.f32 1.5, %v1855
        %v1857 = vmul.f32 %v1852, %v1856
        %vm1858 = vweird.f32 %v1835
        %vm1859 = vweird.f32 %v1852
        %vm1860 = vmor %vm1858, %vm1859
        %v1861 = vsel %vm1860, %v1852, %v1857
        %v1862 = vrsqrt.pop %v1836
        %v1863 = vmul.f32 %v1862, %v1836
        %v1864 = vmul.f32 %v1863, %v1862
        %v1865 = vmul.f32 0.5, %v1864
        %v1866 = vsub.f32 1.5, %v1865
        %v1867 = vmul.f32 %v1862, %v1866
        %vm1868 = vweird.f32 %v1836
        %vm1869 = vweird.f32 %v1862
        %vm1870 = vmor %vm1868, %vm1869
        %v1871 = vsel %vm1870, %v1862, %v1867
        %v1872 = vrsqrt.pop %v1837
        %v1873 = vmul.f32 %v1872, %v1837
        %v1874 = vmul.f32 %v1873, %v1872
        %v1875 = vmul.f32 0.5, %v1874
        %v1876 = vsub.f32 1.5, %v1875
        %v1877 = vmul.f32 %v1872, %v1876
        %vm1878 = vweird.f32 %v1837
        %vm1879 = vweird.f32 %v1872
        %vm1880 = vmor %vm1878, %vm1879
        %v1881 = vsel %vm1880, %v1872, %v1877
        %v1882 = vrsqrt.pop %v1838
        %v1883 = vmul.f32 %v1882, %v1838
        %v1884 = vmul.f32 %v1883, %v1882
        %v1885 = vmul.f32 0.5, %v1884
        %v1886 = vsub.f32 1.5, %v1885
        %v1887 = vmul.f32 %v1882, %v1886
        %vm1888 = vweird.f32 %v1838
        %vm1889 = vweird.f32 %v1882
        %vm1890 = vmor %vm1888, %vm1889
        %v1891 = vsel %vm1890, %v1882, %v1887
        %v1892 = vrsqrt.pop %v1839
        %v1893 = vmul.f32 %v1892, %v1839
        %v1894 = vmul.f32 %v1893, %v1892
        %v1895 = vmul.f32 0.5, %v1894
        %v1896 = vsub.f32 1.5, %v1895
        %v1897 = vmul.f32 %v1892, %v1896
        %vm1898 = vweird.f32 %v1839
        %vm1899 = vweird.f32 %v1892
        %vm1900 = vmor %vm1898, %vm1899
        %v1901 = vsel %vm1900, %v1892, %v1897
        %v1902 = vrsqrt.pop %v1840
        %v1903 = vmul.f32 %v1902, %v1840
        %v1904 = vmul.f32 %v1903, %v1902
        %v1905 = vmul.f32 0.5, %v1904
        %v1906 = vsub.f32 1.5, %v1905
        %v1907 = vmul.f32 %v1902, %v1906
        %vm1908 = vweird.f32 %v1840
        %vm1909 = vweird.f32 %v1902
        %vm1910 = vmor %vm1908, %vm1909
        %v1911 = vsel %vm1910, %v1902, %v1907
        %v1912 = vrsqrt.pop %v1841
        %v1913 = vmul.f32 %v1912, %v1841
        %v1914 = vmul.f32 %v1913, %v1912
        %v1915 = vmul.f32 0.5, %v1914
        %v1916 = vsub.f32 1.5, %v1915
        %v1917 = vmul.f32 %v1912, %v1916
        %vm1918 = vweird.f32 %v1841
        %vm1919 = vweird.f32 %v1912
        %vm1920 = vmor %vm1918, %vm1919
        %v1921 = vsel %vm1920, %v1912, %v1917
        %v1922 = vmul.f32 %v1786, %v1851
        %v1923 = vmul.f32 %v1787, %v1861
        %v1924 = vmul.f32 %v1788, %v1871
        %v1925 = vmul.f32 %v1789, %v1881
        %v1926 = vmul.f32 %v1790, %v1891
        %v1927 = vmul.f32 %v1791, %v1901
        %v1928 = vmul.f32 %v1792, %v1911
        %v1929 = vmul.f32 %v1793, %v1921
        %v1930 = vperm.slane %v788, 2
        %v1931 = vmul.f32 %v1922, %v1930
        %v1932 = vmul.f32 %v1923, %v1930
        %v1933 = vmul.f32 %v1924, %v1930
        %v1934 = vmul.f32 %v1925, %v1930
        %v1935 = vmul.f32 %v1926, %v1930
        %v1936 = vmul.f32 %v1927, %v1930
        %v1937 = vmul.f32 %v1928, %v1930
        %v1938 = vmul.f32 %v1929, %v1930
        %v1939 = vperm.slane %v788, 3
        %v1940 = vadd.f32 %v1931, %v1939
        %v1941 = vadd.f32 %v1932, %v1939
        %v1942 = vadd.f32 %v1933, %v1939
        %v1943 = vadd.f32 %v1934, %v1939
        %v1944 = vadd.f32 %v1935, %v1939
        %v1945 = vadd.f32 %v1936, %v1939
        %v1946 = vadd.f32 %v1937, %v1939
        %v1947 = vadd.f32 %v1938, %v1939
        %v1948 = vpack.c.bf16 %v1941, %v1940
        %v1949 = vpack.c.bf16 %v1943, %v1942
        %v1950 = vpack.c.bf16 %v1945, %v1944
        %v1951 = vpack.c.bf16 %v1947, %v1946
        %v1952 = vld [vmem:[%s552] sm:$0xff]
        %v1953 = vld [vmem:[%s552 + $0x8] sm:$0xff]
        %v1954 = vld [vmem:[%s552 + $0x10] sm:$0xff]
        %v1955 = vld [vmem:[%s552 + $0x18] sm:$0xff]
        %v1956 = vld [vmem:[%s552 + $0x20] sm:$0xff]
        %v1957 = vld [vmem:[%s552 + $0x28] sm:$0xff]
        %v1958 = vld [vmem:[%s552 + $0x30] sm:$0xff]
        %v1959 = vld [vmem:[%s552 + $0x38] sm:$0xff]
        %v1960 = vperm.slane %v788, 4
        %v1961 = vperm.slane %v789, 4
        %v1970 = vunpack.c.l.b16 %v1952
        %v1971 = vunpack.c.h.b16 %v1952
        %v1972 = vunpack.c.l.b16 %v1953
        %v1973 = vunpack.c.h.b16 %v1953
        %v1974 = vunpack.c.l.b16 %v1954
        %v1975 = vunpack.c.h.b16 %v1954
        %v1976 = vunpack.c.l.b16 %v1955
        %v1977 = vunpack.c.h.b16 %v1955
        %v1978 = vunpack.c.l.b16 %v1956
        %v1979 = vunpack.c.h.b16 %v1956
        %v1980 = vunpack.c.l.b16 %v1957
        %v1981 = vunpack.c.h.b16 %v1957
        %v1982 = vunpack.c.l.b16 %v1958
        %v1983 = vunpack.c.h.b16 %v1958
        %v1984 = vunpack.c.l.b16 %v1959
        %v1985 = vunpack.c.h.b16 %v1959
        %v1986 = vpack.c.b16 %v1972, %v1970
        %v1987 = vpack.c.b16 %v1973, %v1971
        %v1988 = vpack.c.b16 %v1976, %v1974
        %v1989 = vpack.c.b16 %v1977, %v1975
        %v1990 = vpack.c.b16 %v1980, %v1978
        %v1991 = vpack.c.b16 %v1981, %v1979
        %v1992 = vpack.c.b16 %v1984, %v1982
        %v1993 = vpack.c.b16 %v1985, %v1983
        %v2003 = vsel %vm852, %v1948, 0
        %v2006 = vsel %vm852, %v1949, 0
        %v2009 = vsel %vm852, %v1950, 0
        %v2012 = vsel %vm852, %v1951, 0
        %2014 = vmatpush.bf16.msra.mxu0 0
        %2015 = vmatpush.bf16.msra.mxu0 0
        %2016 = vmatpush.bf16.msra.mxu0 0
        %2017 = vmatpush.bf16.msra.mxu0 0
        %2018 = vmatpush.bf16.msra.mxu0 %v1992
        %2019 = vmatpush.bf16.msra.mxu0 %v1990
        %2020 = vmatpush.bf16.msra.mxu0 %v1988
        %2021 = vmatpush.bf16.msra.mxu0 %v1986
        %2022 = vmatmul.bf16.gmra.mxu0 %v2003
        %v2023 = vpop.f32.mrf.mxu0
        %v2024 = vadd.f32 %v1960, %v2023
        %v2025 = vpop.f32.mrf.mxu0
        %v2026 = vadd.f32 %v1960, %v2025
        %2027 = vmatmul.bf16.gmra.mxu0 %v2006
        %v2028 = vpop.f32.mrf.mxu0
        %v2029 = vadd.f32 %v1960, %v2028
        %v2030 = vpop.f32.mrf.mxu0
        %v2031 = vadd.f32 %v1960, %v2030
        %2032 = vmatmul.bf16.gmra.mxu0 %v2009
        %v2033 = vpop.f32.mrf.mxu0
        %v2034 = vadd.f32 %v1960, %v2033
        %v2035 = vpop.f32.mrf.mxu0
        %v2036 = vadd.f32 %v1960, %v2035
        %2037 = vmatmul.bf16.gmra.mxu0 %v2012
        %v2038 = vpop.f32.mrf.mxu0
        %v2039 = vadd.f32 %v1960, %v2038
        %v2040 = vpop.f32.mrf.mxu0
        %v2041 = vadd.f32 %v1960, %v2040
        %2042 = vdwg.mxu0
        %2043 = vmatpush.bf16.msra.mxu0 0
        %2044 = vmatpush.bf16.msra.mxu0 0
        %2045 = vmatpush.bf16.msra.mxu0 0
        %2046 = vmatpush.bf16.msra.mxu0 0
        %2047 = vmatpush.bf16.msra.mxu0 %v1993
        %2048 = vmatpush.bf16.msra.mxu0 %v1991
        %2049 = vmatpush.bf16.msra.mxu0 %v1989
        %2050 = vmatpush.bf16.msra.mxu0 %v1987
        %2051 = vmatmul.bf16.gmra.mxu0 %v2003
        %v2052 = vpop.f32.mrf.mxu0
        %v2053 = vadd.f32 %v1961, %v2052
        %v2054 = vpop.f32.mrf.mxu0
        %v2055 = vadd.f32 %v1961, %v2054
        %2056 = vmatmul.bf16.gmra.mxu0 %v2006
        %v2057 = vpop.f32.mrf.mxu0
        %v2058 = vadd.f32 %v1961, %v2057
        %v2059 = vpop.f32.mrf.mxu0
        %v2060 = vadd.f32 %v1961, %v2059
        %2061 = vmatmul.bf16.gmra.mxu0 %v2009
        %v2062 = vpop.f32.mrf.mxu0
        %v2063 = vadd.f32 %v1961, %v2062
        %v2064 = vpop.f32.mrf.mxu0
        %v2065 = vadd.f32 %v1961, %v2064
        %2066 = vmatmul.bf16.gmra.mxu0 %v2012
        %v2067 = vpop.f32.mrf.mxu0
        %v2068 = vadd.f32 %v1961, %v2067
        %v2069 = vpop.f32.mrf.mxu0
        %v2070 = vadd.f32 %v1961, %v2069
        %2071 = vdwg.mxu0
        %v2072 = vmul.f32 %v2024, 0.5
        %v2073 = vmul.f32 %v2053, 0.5
        %v2074 = vmul.f32 %v2026, 0.5
        %v2075 = vmul.f32 %v2055, 0.5
        %v2076 = vmul.f32 %v2029, 0.5
        %v2077 = vmul.f32 %v2058, 0.5
        %v2078 = vmul.f32 %v2031, 0.5
        %v2079 = vmul.f32 %v2060, 0.5
        %v2080 = vmul.f32 %v2034, 0.5
        %v2081 = vmul.f32 %v2063, 0.5
        %v2082 = vmul.f32 %v2036, 0.5
        %v2083 = vmul.f32 %v2065, 0.5
        %v2084 = vmul.f32 %v2039, 0.5
        %v2085 = vmul.f32 %v2068, 0.5
        %v2086 = vmul.f32 %v2041, 0.5
        %v2087 = vmul.f32 %v2070, 0.5
        %v2088 = vmul.f32 %v2024, 0.044715
        %v2089 = vmul.f32 %v2053, 0.044715
        %v2090 = vmul.f32 %v2026, 0.044715
        %v2091 = vmul.f32 %v2055, 0.044715
        %v2092 = vmul.f32 %v2029, 0.044715
        %v2093 = vmul.f32 %v2058, 0.044715
        %v2094 = vmul.f32 %v2031, 0.044715
        %v2095 = vmul.f32 %v2060, 0.044715
        %v2096 = vmul.f32 %v2034, 0.044715
        %v2097 = vmul.f32 %v2063, 0.044715
        %v2098 = vmul.f32 %v2036, 0.044715
        %v2099 = vmul.f32 %v2065, 0.044715
        %v2100 = vmul.f32 %v2039, 0.044715
        %v2101 = vmul.f32 %v2068, 0.044715
        %v2102 = vmul.f32 %v2041, 0.044715
        %v2103 = vmul.f32 %v2070, 0.044715
        %v2104 = vmul.f32 %v2088, %v2024
        %v2105 = vmul.f32 %v2089, %v2053
        %v2106 = vmul.f32 %v2090, %v2026
        %v2107 = vmul.f32 %v2091, %v2055
        %v2108 = vmul.f32 %v2092, %v2029
        %v2109 = vmul.f32 %v2093, %v2058
        %v2110 = vmul.f32 %v2094, %v2031
        %v2111 = vmul.f32 %v2095, %v2060
        %v2112 = vmul.f32 %v2096, %v2034
        %v2113 = vmul.f32 %v2097, %v2063
        %v2114 = vmul.f32 %v2098, %v2036
        %v2115 = vmul.f32 %v2099, %v2065
        %v2116 = vmul.f32 %v2100, %v2039
        %v2117 = vmul.f32 %v2101, %v2068
        %v2118 = vmul.f32 %v2102, %v2041
        %v2119 = vmul.f32 %v2103, %v2070
        %v2120 = vmul.f32 %v2104, %v2024
        %v2121 = vmul.f32 %v2105, %v2053
        %v2122 = vmul.f32 %v2106, %v2026
        %v2123 = vmul.f32 %v2107, %v2055
        %v2124 = vmul.f32 %v2108, %v2029
        %v2125 = vmul.f32 %v2109, %v2058
        %v2126 = vmul.f32 %v2110, %v2031
        %v2127 = vmul.f32 %v2111, %v2060
        %v2128 = vmul.f32 %v2112, %v2034
        %v2129 = vmul.f32 %v2113, %v2063
        %v2130 = vmul.f32 %v2114, %v2036
        %v2131 = vmul.f32 %v2115, %v2065
        %v2132 = vmul.f32 %v2116, %v2039
        %v2133 = vmul.f32 %v2117, %v2068
        %v2134 = vmul.f32 %v2118, %v2041
        %v2135 = vmul.f32 %v2119, %v2070
        %v2136 = vadd.f32 %v2024, %v2120
        %v2137 = vadd.f32 %v2053, %v2121
        %v2138 = vadd.f32 %v2026, %v2122
        %v2139 = vadd.f32 %v2055, %v2123
        %v2140 = vadd.f32 %v2029, %v2124
        %v2141 = vadd.f32 %v2058, %v2125
        %v2142 = vadd.f32 %v2031, %v2126
        %v2143 = vadd.f32 %v2060, %v2127
        %v2144 = vadd.f32 %v2034, %v2128
        %v2145 = vadd.f32 %v2063, %v2129
        %v2146 = vadd.f32 %v2036, %v2130
        %v2147 = vadd.f32 %v2065, %v2131
        %v2148 = vadd.f32 %v2039, %v2132
        %v2149 = vadd.f32 %v2068, %v2133
        %v2150 = vadd.f32 %v2041, %v2134
        %v2151 = vadd.f32 %v2070, %v2135
        %v2152 = vmul.f32 %v2136, 0.7978846
        %v2153 = vmul.f32 %v2137, 0.7978846
        %v2154 = vmul.f32 %v2138, 0.7978846
        %v2155 = vmul.f32 %v2139, 0.7978846
        %v2156 = vmul.f32 %v2140, 0.7978846
        %v2157 = vmul.f32 %v2141, 0.7978846
        %v2158 = vmul.f32 %v2142, 0.7978846
        %v2159 = vmul.f32 %v2143, 0.7978846
        %v2160 = vmul.f32 %v2144, 0.7978846
        %v2161 = vmul.f32 %v2145, 0.7978846
        %v2162 = vmul.f32 %v2146, 0.7978846
        %v2163 = vmul.f32 %v2147, 0.7978846
        %v2164 = vmul.f32 %v2148, 0.7978846
        %v2165 = vmul.f32 %v2149, 0.7978846
        %v2166 = vmul.f32 %v2150, 0.7978846
        %v2167 = vmul.f32 %v2151, 0.7978846
        %v2168 = vtanh.pop %v2152
        %v2169 = vtanh.pop %v2153
        %v2170 = vtanh.pop %v2154
        %v2171 = vtanh.pop %v2155
        %v2172 = vtanh.pop %v2156
        %v2173 = vtanh.pop %v2157
        %v2174 = vtanh.pop %v2158
        %v2175 = vtanh.pop %v2159
        %v2176 = vtanh.pop %v2160
        %v2177 = vtanh.pop %v2161
        %v2178 = vtanh.pop %v2162
        %v2179 = vtanh.pop %v2163
        %v2180 = vtanh.pop %v2164
        %v2181 = vtanh.pop %v2165
        %v2182 = vtanh.pop %v2166
        %v2183 = vtanh.pop %v2167
        %v2184 = vadd.f32 %v2168, 1.0
        %v2185 = vadd.f32 %v2169, 1.0
        %v2186 = vadd.f32 %v2170, 1.0
        %v2187 = vadd.f32 %v2171, 1.0
        %v2188 = vadd.f32 %v2172, 1.0
        %v2189 = vadd.f32 %v2173, 1.0
        %v2190 = vadd.f32 %v2174, 1.0
        %v2191 = vadd.f32 %v2175, 1.0
        %v2192 = vadd.f32 %v2176, 1.0
        %v2193 = vadd.f32 %v2177, 1.0
        %v2194 = vadd.f32 %v2178, 1.0
        %v2195 = vadd.f32 %v2179, 1.0
        %v2196 = vadd.f32 %v2180, 1.0
        %v2197 = vadd.f32 %v2181, 1.0
        %v2198 = vadd.f32 %v2182, 1.0
        %v2199 = vadd.f32 %v2183, 1.0
        %v2200 = vmul.f32 %v2072, %v2184
        %v2201 = vmul.f32 %v2073, %v2185
        %v2202 = vmul.f32 %v2074, %v2186
        %v2203 = vmul.f32 %v2075, %v2187
        %v2204 = vmul.f32 %v2076, %v2188
        %v2205 = vmul.f32 %v2077, %v2189
        %v2206 = vmul.f32 %v2078, %v2190
        %v2207 = vmul.f32 %v2079, %v2191
        %v2208 = vmul.f32 %v2080, %v2192
        %v2209 = vmul.f32 %v2081, %v2193
        %v2210 = vmul.f32 %v2082, %v2194
        %v2211 = vmul.f32 %v2083, %v2195
        %v2212 = vmul.f32 %v2084, %v2196
        %v2213 = vmul.f32 %v2085, %v2197
        %v2214 = vmul.f32 %v2086, %v2198
        %v2215 = vmul.f32 %v2087, %v2199
        %v2216 = vpack.c.bf16 %v2202, %v2200
        %v2217 = vpack.c.bf16 %v2203, %v2201
        %v2218 = vpack.c.bf16 %v2206, %v2204
        %v2219 = vpack.c.bf16 %v2207, %v2205
        %v2220 = vpack.c.bf16 %v2210, %v2208
        %v2221 = vpack.c.bf16 %v2211, %v2209
        %v2222 = vpack.c.bf16 %v2214, %v2212
        %v2223 = vpack.c.bf16 %v2215, %v2213
        %v2224 = vld [vmem:[%s557] sm:$0xf]
        %v2225 = vld [vmem:[%s557 + $0x4] sm:$0xf]
        %v2226 = vld [vmem:[%s557 + $0x8] sm:$0xf]
        %v2227 = vld [vmem:[%s557 + $0xc] sm:$0xf]
        %v2228 = vld [vmem:[%s557 + $0x10] sm:$0xf]
        %v2229 = vld [vmem:[%s557 + $0x14] sm:$0xf]
        %v2230 = vld [vmem:[%s557 + $0x18] sm:$0xf]
        %v2231 = vld [vmem:[%s557 + $0x1c] sm:$0xf]
        %v2232 = vld [vmem:[%s557 + $0x20] sm:$0xf]
        %v2233 = vld [vmem:[%s557 + $0x24] sm:$0xf]
        %v2234 = vld [vmem:[%s557 + $0x28] sm:$0xf]
        %v2235 = vld [vmem:[%s557 + $0x2c] sm:$0xf]
        %v2236 = vld [vmem:[%s557 + $0x30] sm:$0xf]
        %v2237 = vld [vmem:[%s557 + $0x34] sm:$0xf]
        %v2238 = vld [vmem:[%s557 + $0x38] sm:$0xf]
        %v2239 = vld [vmem:[%s557 + $0x3c] sm:$0xf]
        %v2240 = vld [vmem:[%s557 + $0x40] sm:$0xf]
        %v2241 = vld [vmem:[%s557 + $0x44] sm:$0xf]
        %v2242 = vld [vmem:[%s557 + $0x48] sm:$0xf]
        %v2243 = vld [vmem:[%s557 + $0x4c] sm:$0xf]
        %v2244 = vld [vmem:[%s557 + $0x50] sm:$0xf]
        %v2245 = vld [vmem:[%s557 + $0x54] sm:$0xf]
        %v2246 = vld [vmem:[%s557 + $0x58] sm:$0xf]
        %v2247 = vld [vmem:[%s557 + $0x5c] sm:$0xf]
        %v2248 = vld [vmem:[%s557 + $0x60] sm:$0xf]
        %v2249 = vld [vmem:[%s557 + $0x64] sm:$0xf]
        %v2250 = vld [vmem:[%s557 + $0x68] sm:$0xf]
        %v2251 = vld [vmem:[%s557 + $0x6c] sm:$0xf]
        %v2252 = vld [vmem:[%s557 + $0x70] sm:$0xf]
        %v2253 = vld [vmem:[%s557 + $0x74] sm:$0xf]
        %v2254 = vld [vmem:[%s557 + $0x78] sm:$0xf]
        %v2255 = vld [vmem:[%s557 + $0x7c] sm:$0xf]
        %v2256 = vperm.slane %v788, 5
        %v2289 = vunpack.c.l.b16 %v2224
        %v2290 = vunpack.c.l.b16 %v2225
        %v2291 = vunpack.c.l.b16 %v2226
        %v2292 = vunpack.c.l.b16 %v2227
        %v2293 = vunpack.c.l.b16 %v2228
        %v2294 = vunpack.c.l.b16 %v2229
        %v2295 = vunpack.c.l.b16 %v2230
        %v2296 = vunpack.c.l.b16 %v2231
        %v2297 = vunpack.c.l.b16 %v2232
        %v2298 = vunpack.c.l.b16 %v2233
        %v2299 = vunpack.c.l.b16 %v2234
        %v2300 = vunpack.c.l.b16 %v2235
        %v2301 = vunpack.c.l.b16 %v2236
        %v2302 = vunpack.c.l.b16 %v2237
        %v2303 = vunpack.c.l.b16 %v2238
        %v2304 = vunpack.c.l.b16 %v2239
        %v2305 = vunpack.c.l.b16 %v2240
        %v2306 = vunpack.c.l.b16 %v2241
        %v2307 = vunpack.c.l.b16 %v2242
        %v2308 = vunpack.c.l.b16 %v2243
        %v2309 = vunpack.c.l.b16 %v2244
        %v2310 = vunpack.c.l.b16 %v2245
        %v2311 = vunpack.c.l.b16 %v2246
        %v2312 = vunpack.c.l.b16 %v2247
        %v2313 = vunpack.c.l.b16 %v2248
        %v2314 = vunpack.c.l.b16 %v2249
        %v2315 = vunpack.c.l.b16 %v2250
        %v2316 = vunpack.c.l.b16 %v2251
        %v2317 = vunpack.c.l.b16 %v2252
        %v2318 = vunpack.c.l.b16 %v2253
        %v2319 = vunpack.c.l.b16 %v2254
        %v2320 = vunpack.c.l.b16 %v2255
        %v2321 = vpack.c.b16 %v2290, %v2289
        %v2322 = vpack.c.b16 %v2292, %v2291
        %v2323 = vpack.c.b16 %v2294, %v2293
        %v2324 = vpack.c.b16 %v2296, %v2295
        %v2325 = vpack.c.b16 %v2298, %v2297
        %v2326 = vpack.c.b16 %v2300, %v2299
        %v2327 = vpack.c.b16 %v2302, %v2301
        %v2328 = vpack.c.b16 %v2304, %v2303
        %v2329 = vpack.c.b16 %v2306, %v2305
        %v2330 = vpack.c.b16 %v2308, %v2307
        %v2331 = vpack.c.b16 %v2310, %v2309
        %v2332 = vpack.c.b16 %v2312, %v2311
        %v2333 = vpack.c.b16 %v2314, %v2313
        %v2334 = vpack.c.b16 %v2316, %v2315
        %v2335 = vpack.c.b16 %v2318, %v2317
        %v2336 = vpack.c.b16 %v2320, %v2319
        %2353 = vmatpush.bf16.msra.mxu0 %v2328
        %2354 = vmatpush.bf16.msra.mxu0 %v2327
        %2355 = vmatpush.bf16.msra.mxu0 %v2326
        %2356 = vmatpush.bf16.msra.mxu0 %v2325
        %2357 = vmatpush.bf16.msra.mxu0 %v2324
        %2358 = vmatpush.bf16.msra.mxu0 %v2323
        %2359 = vmatpush.bf16.msra.mxu0 %v2322
        %2360 = vmatpush.bf16.msra.mxu0 %v2321
        %2361 = vmatmul.bf16.gmra.mxu0 %v2216
        %v2362 = vpop.f32.mrf.mxu0
        %v2363 = vadd.f32 %v2256, %v2362
        %v2364 = vpop.f32.mrf.mxu0
        %v2365 = vadd.f32 %v2256, %v2364
        %2366 = vmatmul.bf16.gmra.mxu0 %v2218
        %v2367 = vpop.f32.mrf.mxu0
        %v2368 = vadd.f32 %v2256, %v2367
        %v2369 = vpop.f32.mrf.mxu0
        %v2370 = vadd.f32 %v2256, %v2369
        %2371 = vmatmul.bf16.gmra.mxu0 %v2220
        %v2372 = vpop.f32.mrf.mxu0
        %v2373 = vadd.f32 %v2256, %v2372
        %v2374 = vpop.f32.mrf.mxu0
        %v2375 = vadd.f32 %v2256, %v2374
        %2376 = vmatmul.bf16.gmra.mxu0 %v2222
        %v2377 = vpop.f32.mrf.mxu0
        %v2378 = vadd.f32 %v2256, %v2377
        %v2379 = vpop.f32.mrf.mxu0
        %v2380 = vadd.f32 %v2256, %v2379
        %2381 = vdwg.mxu0
        %2382 = vmatpush.bf16.msra.mxu0 %v2336
        %2383 = vmatpush.bf16.msra.mxu0 %v2335
        %2384 = vmatpush.bf16.msra.mxu0 %v2334
        %2385 = vmatpush.bf16.msra.mxu0 %v2333
        %2386 = vmatpush.bf16.msra.mxu0 %v2332
        %2387 = vmatpush.bf16.msra.mxu0 %v2331
        %2388 = vmatpush.bf16.msra.mxu0 %v2330
        %2389 = vmatpush.bf16.msra.mxu0 %v2329
        %2390 = vmatmul.bf16.gmra.mxu0 %v2217
        %v2391 = vpop.f32.mrf.mxu0
        %v2392 = vadd.f32 %v2363, %v2391
        %v2393 = vpop.f32.mrf.mxu0
        %v2394 = vadd.f32 %v2365, %v2393
        %2395 = vmatmul.bf16.gmra.mxu0 %v2219
        %v2396 = vpop.f32.mrf.mxu0
        %v2397 = vadd.f32 %v2368, %v2396
        %v2398 = vpop.f32.mrf.mxu0
        %v2399 = vadd.f32 %v2370, %v2398
        %2400 = vmatmul.bf16.gmra.mxu0 %v2221
        %v2401 = vpop.f32.mrf.mxu0
        %v2402 = vadd.f32 %v2373, %v2401
        %v2403 = vpop.f32.mrf.mxu0
        %v2404 = vadd.f32 %v2375, %v2403
        %2405 = vmatmul.bf16.gmra.mxu0 %v2223
        %v2406 = vpop.f32.mrf.mxu0
        %v2407 = vadd.f32 %v2378, %v2406
        %v2408 = vpop.f32.mrf.mxu0
        %v2409 = vadd.f32 %v2380, %v2408
        %2410 = vdwg.mxu0
        %v2411 = vadd.f32 %v2392, %v1940
        %v2412 = vadd.f32 %v2394, %v1941
        %v2413 = vadd.f32 %v2397, %v1942
        %v2414 = vadd.f32 %v2399, %v1943
        %v2415 = vadd.f32 %v2402, %v1944
        %v2416 = vadd.f32 %v2404, %v1945
        %v2417 = vadd.f32 %v2407, %v1946
        %v2418 = vadd.f32 %v2409, %v1947
        %v2419 = vsel %vm852, %v2411, 0.0
        %2420 = vadd.xlane.f32.xlu0 %v2419
        %v2421 = vpop.xlane.xlu0 %2420
        %v2422 = vsel %vm852, %v2412, 0.0
        %2423 = vadd.xlane.f32.xlu0 %v2422
        %v2424 = vpop.xlane.xlu0 %2423
        %v2425 = vsel %vm852, %v2413, 0.0
        %2426 = vadd.xlane.f32.xlu0 %v2425
        %v2427 = vpop.xlane.xlu0 %2426
        %v2428 = vsel %vm852, %v2414, 0.0
        %2429 = vadd.xlane.f32.xlu0 %v2428
        %v2430 = vpop.xlane.xlu0 %2429
        %v2431 = vsel %vm852, %v2415, 0.0
        %2432 = vadd.xlane.f32.xlu0 %v2431
        %v2433 = vpop.xlane.xlu0 %2432
        %v2434 = vsel %vm852, %v2416, 0.0
        %2435 = vadd.xlane.f32.xlu0 %v2434
        %v2436 = vpop.xlane.xlu0 %2435
        %v2437 = vsel %vm852, %v2417, 0.0
        %2438 = vadd.xlane.f32.xlu0 %v2437
        %v2439 = vpop.xlane.xlu0 %2438
        %v2440 = vsel %vm852, %v2418, 0.0
        %2441 = vadd.xlane.f32.xlu0 %v2440
        %v2442 = vpop.xlane.xlu0 %2441
        %v2443 = vmul.f32 %v2421, %v1777
        %v2444 = vmul.f32 %v2424, %v1777
        %v2445 = vmul.f32 %v2427, %v1777
        %v2446 = vmul.f32 %v2430, %v1777
        %v2447 = vmul.f32 %v2433, %v1777
        %v2448 = vmul.f32 %v2436, %v1777
        %v2449 = vmul.f32 %v2439, %v1777
        %v2450 = vmul.f32 %v2442, %v1777
        %v2451 = vsub.f32 %v2411, %v2443
        %v2452 = vsub.f32 %v2412, %v2444
        %v2453 = vsub.f32 %v2413, %v2445
        %v2454 = vsub.f32 %v2414, %v2446
        %v2455 = vsub.f32 %v2415, %v2447
        %v2456 = vsub.f32 %v2416, %v2448
        %v2457 = vsub.f32 %v2417, %v2449
        %v2458 = vsub.f32 %v2418, %v2450
        %v2459 = vmul.f32 %v2451, %v2451
        %v2460 = vmul.f32 %v2452, %v2452
        %v2461 = vmul.f32 %v2453, %v2453
        %v2462 = vmul.f32 %v2454, %v2454
        %v2463 = vmul.f32 %v2455, %v2455
        %v2464 = vmul.f32 %v2456, %v2456
        %v2465 = vmul.f32 %v2457, %v2457
        %v2466 = vmul.f32 %v2458, %v2458
        %v2467 = vsel %vm852, %v2459, 0.0
        %2468 = vadd.xlane.f32.xlu0 %v2467
        %v2469 = vpop.xlane.xlu0 %2468
        %v2470 = vsel %vm852, %v2460, 0.0
        %2471 = vadd.xlane.f32.xlu0 %v2470
        %v2472 = vpop.xlane.xlu0 %2471
        %v2473 = vsel %vm852, %v2461, 0.0
        %2474 = vadd.xlane.f32.xlu0 %v2473
        %v2475 = vpop.xlane.xlu0 %2474
        %v2476 = vsel %vm852, %v2462, 0.0
        %2477 = vadd.xlane.f32.xlu0 %v2476
        %v2478 = vpop.xlane.xlu0 %2477
        %v2479 = vsel %vm852, %v2463, 0.0
        %2480 = vadd.xlane.f32.xlu0 %v2479
        %v2481 = vpop.xlane.xlu0 %2480
        %v2482 = vsel %vm852, %v2464, 0.0
        %2483 = vadd.xlane.f32.xlu0 %v2482
        %v2484 = vpop.xlane.xlu0 %2483
        %v2485 = vsel %vm852, %v2465, 0.0
        %2486 = vadd.xlane.f32.xlu0 %v2485
        %v2487 = vpop.xlane.xlu0 %2486
        %v2488 = vsel %vm852, %v2466, 0.0
        %2489 = vadd.xlane.f32.xlu0 %v2488
        %v2490 = vpop.xlane.xlu0 %2489
        %v2491 = vmul.f32 %v2469, %v1777
        %v2492 = vmul.f32 %v2472, %v1777
        %v2493 = vmul.f32 %v2475, %v1777
        %v2494 = vmul.f32 %v2478, %v1777
        %v2495 = vmul.f32 %v2481, %v1777
        %v2496 = vmul.f32 %v2484, %v1777
        %v2497 = vmul.f32 %v2487, %v1777
        %v2498 = vmul.f32 %v2490, %v1777
        %v2499 = vadd.f32 %v2491, 1e-12
        %v2500 = vadd.f32 %v2492, 1e-12
        %v2501 = vadd.f32 %v2493, 1e-12
        %v2502 = vadd.f32 %v2494, 1e-12
        %v2503 = vadd.f32 %v2495, 1e-12
        %v2504 = vadd.f32 %v2496, 1e-12
        %v2505 = vadd.f32 %v2497, 1e-12
        %v2506 = vadd.f32 %v2498, 1e-12
        %v2507 = vrsqrt.pop %v2499
        %v2508 = vmul.f32 %v2507, %v2499
        %v2509 = vmul.f32 %v2508, %v2507
        %v2510 = vmul.f32 0.5, %v2509
        %v2511 = vsub.f32 1.5, %v2510
        %v2512 = vmul.f32 %v2507, %v2511
        %vm2513 = vweird.f32 %v2499
        %vm2514 = vweird.f32 %v2507
        %vm2515 = vmor %vm2513, %vm2514
        %v2516 = vsel %vm2515, %v2507, %v2512
        %v2517 = vrsqrt.pop %v2500
        %v2518 = vmul.f32 %v2517, %v2500
        %v2519 = vmul.f32 %v2518, %v2517
        %v2520 = vmul.f32 0.5, %v2519
        %v2521 = vsub.f32 1.5, %v2520
        %v2522 = vmul.f32 %v2517, %v2521
        %vm2523 = vweird.f32 %v2500
        %vm2524 = vweird.f32 %v2517
        %vm2525 = vmor %vm2523, %vm2524
        %v2526 = vsel %vm2525, %v2517, %v2522
        %v2527 = vrsqrt.pop %v2501
        %v2528 = vmul.f32 %v2527, %v2501
        %v2529 = vmul.f32 %v2528, %v2527
        %v2530 = vmul.f32 0.5, %v2529
        %v2531 = vsub.f32 1.5, %v2530
        %v2532 = vmul.f32 %v2527, %v2531
        %vm2533 = vweird.f32 %v2501
        %vm2534 = vweird.f32 %v2527
        %vm2535 = vmor %vm2533, %vm2534
        %v2536 = vsel %vm2535, %v2527, %v2532
        %v2537 = vrsqrt.pop %v2502
        %v2538 = vmul.f32 %v2537, %v2502
        %v2539 = vmul.f32 %v2538, %v2537
        %v2540 = vmul.f32 0.5, %v2539
        %v2541 = vsub.f32 1.5, %v2540
        %v2542 = vmul.f32 %v2537, %v2541
        %vm2543 = vweird.f32 %v2502
        %vm2544 = vweird.f32 %v2537
        %vm2545 = vmor %vm2543, %vm2544
        %v2546 = vsel %vm2545, %v2537, %v2542
        %v2547 = vrsqrt.pop %v2503
        %v2548 = vmul.f32 %v2547, %v2503
        %v2549 = vmul.f32 %v2548, %v2547
        %v2550 = vmul.f32 0.5, %v2549
        %v2551 = vsub.f32 1.5, %v2550
        %v2552 = vmul.f32 %v2547, %v2551
        %vm2553 = vweird.f32 %v2503
        %vm2554 = vweird.f32 %v2547
        %vm2555 = vmor %vm2553, %vm2554
        %v2556 = vsel %vm2555, %v2547, %v2552
        %v2557 = vrsqrt.pop %v2504
        %v2558 = vmul.f32 %v2557, %v2504
        %v2559 = vmul.f32 %v2558, %v2557
        %v2560 = vmul.f32 0.5, %v2559
        %v2561 = vsub.f32 1.5, %v2560
        %v2562 = vmul.f32 %v2557, %v2561
        %vm2563 = vweird.f32 %v2504
        %vm2564 = vweird.f32 %v2557
        %vm2565 = vmor %vm2563, %vm2564
        %v2566 = vsel %vm2565, %v2557, %v2562
        %v2567 = vrsqrt.pop %v2505
        %v2568 = vmul.f32 %v2567, %v2505
        %v2569 = vmul.f32 %v2568, %v2567
        %v2570 = vmul.f32 0.5, %v2569
        %v2571 = vsub.f32 1.5, %v2570
        %v2572 = vmul.f32 %v2567, %v2571
        %vm2573 = vweird.f32 %v2505
        %vm2574 = vweird.f32 %v2567
        %vm2575 = vmor %vm2573, %vm2574
        %v2576 = vsel %vm2575, %v2567, %v2572
        %v2577 = vrsqrt.pop %v2506
        %v2578 = vmul.f32 %v2577, %v2506
        %v2579 = vmul.f32 %v2578, %v2577
        %v2580 = vmul.f32 0.5, %v2579
        %v2581 = vsub.f32 1.5, %v2580
        %v2582 = vmul.f32 %v2577, %v2581
        %vm2583 = vweird.f32 %v2506
        %vm2584 = vweird.f32 %v2577
        %vm2585 = vmor %vm2583, %vm2584
        %v2586 = vsel %vm2585, %v2577, %v2582
        %v2587 = vmul.f32 %v2451, %v2516
        %v2588 = vmul.f32 %v2452, %v2526
        %v2589 = vmul.f32 %v2453, %v2536
        %v2590 = vmul.f32 %v2454, %v2546
        %v2591 = vmul.f32 %v2455, %v2556
        %v2592 = vmul.f32 %v2456, %v2566
        %v2593 = vmul.f32 %v2457, %v2576
        %v2594 = vmul.f32 %v2458, %v2586
        %v2595 = vperm.slane %v788, 6
        %v2596 = vmul.f32 %v2587, %v2595
        %v2597 = vmul.f32 %v2588, %v2595
        %v2598 = vmul.f32 %v2589, %v2595
        %v2599 = vmul.f32 %v2590, %v2595
        %v2600 = vmul.f32 %v2591, %v2595
        %v2601 = vmul.f32 %v2592, %v2595
        %v2602 = vmul.f32 %v2593, %v2595
        %v2603 = vmul.f32 %v2594, %v2595
        %v2604 = vperm.slane %v788, 7
        %v2605 = vadd.f32 %v2596, %v2604
        %v2606 = vadd.f32 %v2597, %v2604
        %v2607 = vadd.f32 %v2598, %v2604
        %v2608 = vadd.f32 %v2599, %v2604
        %v2609 = vadd.f32 %v2600, %v2604
        %v2610 = vadd.f32 %v2601, %v2604
        %v2611 = vadd.f32 %v2602, %v2604
        %v2612 = vadd.f32 %v2603, %v2604
        %2613 = vst.msk [vmem:[%s534] sm:$0xff] %vm852, %v2605
        %2614 = vst.msk [vmem:[%s534 + $0x8] sm:$0xff] %vm852, %v2606
        %2615 = vst.msk [vmem:[%s534 + $0x10] sm:$0xff] %vm852, %v2607
        %2616 = vst.msk [vmem:[%s534 + $0x18] sm:$0xff] %vm852, %v2608
        %2617 = vst.msk [vmem:[%s534 + $0x20] sm:$0xff] %vm852, %v2609
        %2618 = vst.msk [vmem:[%s534 + $0x28] sm:$0xff] %vm852, %v2610
        %2619 = vst.msk [vmem:[%s534 + $0x30] sm:$0xff] %vm852, %v2611
        %2620 = vst.msk [vmem:[%s534 + $0x38] sm:$0xff] %vm852, %v2612
        %s2621 = sand.u32 %s274, 1
        %s2622 = scalar_lea.sflag [#allocation4], %s2621
        %s2623 = sand.u32 %s274, 1
        %s2624 = smul.addr %s2623, 64
        %s2625 = scalar_lea.vmem [#allocation11], %s2624
        // Predicated region
        $region81: #{tpu_custom_call.1} parent=55 // pred_check
          %p2626 = pneg %p284
        $region82: #{tpu_custom_call.1} parent=55 // pred_check_branch
          %2628 = sbr.rel (%p2626) target = $region84
        $region83: #{tpu_custom_call.1} parent=55 // pred_region
          %s2629 = smul.u32 4, %s34
          %2631 = vsyncadd %s2622, 0
          %s2632 = smul.addr %s2629, 2
          %s2633 = smul.addr %s2632, 8
          %s2634 = scalar_lea.hbm %s9, %s2633
          %s2635 = sshll.u32 %s2625, 4
          %s2636 = int_to_ptr.vmem [resolvable:$true] %s2635
          %s2637 = sshll.u32 %s2634, 4
          %s2638 = int_to_ptr.hbm [resolvable:$true] %s2637
          %2643 = dma.vmem_to_hbm [thread:$0]  %s2636, 1024, %s2638, %s2622, 128, 128, 8
        $region84: #{tpu_custom_call.1} parent=55 // pred_fallthru
          _
      $region56: #{tpu_custom_call.1} parent=5 // pred_fallthru
        _
      %p2644 = scmp.le.s32.totalorder 2, %s25
      // Predicated region
      $region85: #{tpu_custom_call.1} parent=5 // pred_check
        %p2645 = pneg %p2644
      $region86: #{tpu_custom_call.1} parent=5 // pred_check_branch
        %2647 = sbr.rel (%p2645) target = $region88
      $region87: #{tpu_custom_call.1} parent=5 // pred_region
        %s2648 = ssub.s32 %s25, 2
        // Predicated region
        $region89: #{tpu_custom_call.1} parent=87 // pred_check
          %p2649 = pneg %p290
        $region90: #{tpu_custom_call.1} parent=87 // pred_check_branch
          %2651 = sbr.rel (%p2649) target = $region92
        $region91: #{tpu_custom_call.1} parent=87 // pred_region
          %s2652 = sand.u32 %s275, 1
          %s2653 = scalar_lea.sflag [#allocation4], %s2652
          %s2654 = sand.u32 %s275, 1
          %s2655 = smul.addr %s2654, 64
          %s2656 = scalar_lea.vmem [#allocation11], %s2655
          %2658 = dma.done %s2653, 1024
        $region92: #{tpu_custom_call.1} parent=87 // pred_fallthru
          _
      $region88: #{tpu_custom_call.1} parent=5 // pred_fallthru
        _
    $region6: #{tpu_custom_call.1} parent=1 // loop_footer
      %s29 = sadd.s32 1, %s25
    $region7: #{tpu_custom_call.1} parent=1 // loop_footer_branch
      %24 = sbr.rel target = $region3
    $region8: #{tpu_custom_call.1} parent=1 // loop_exit
      _
    %2659 = vsyncpa [#allocation3], 1
    %s2660 = scalar_lea.sflag [#allocation3], 1
    %2661 = vsyncpa %s2660, 1
    %2662 = vsyncpa [#allocation6], 1
    %2663 = vsyncpa [#allocation9], 1
    %s2664 = scalar_lea.sflag [#allocation9], 1
    %2665 = vsyncpa %s2664, 1
    %2666 = vsyncpa [#allocation4], 1
    %s2667 = scalar_lea.sflag [#allocation4], 1
    %2668 = vsyncpa %s2667, 1

</llo_original>
